<compile_context>
chip_gen: v5e
topology: v5e:2x2
jax: 0.10.0
libtpu: 0.0.40
codegen_flags: <defaults>
</compile_context>

<pallas_src>
import functools

import jax
import jax.numpy as jnp
from jax.experimental import pallas as pl
from jax.experimental.pallas import tpu as pltpu

NUM_OPS = 8          # addition, subtraction, mul, div, exp, log, matrix, trig
OPS_PAD = 128        # operation logits padded to one full lane width
_NEG_BIG = -1e30     # bias for padded logit lanes -> softmax weight is 0


def _round_up(x, m):
    return (x + m - 1) // m * m


def _vmem_capacity_bytes():
    # Per-TensorCore VMEM: 128 MiB on v5e/v6e, 64 MiB on v7x.
    try:
        return int(pltpu.get_tpu_info().vmem_capacity_bytes)
    except Exception:
        return 64 << 20     # conservative fallback, safe on every generation


def _gelu(x):
    # tanh-approximate GELU: tanh runs on the EUP (its own VLIW slot), so it is
    # essentially free next to the MXU/VPU work.  Differs from torch's exact
    # erf GELU by <~1e-3.
    c = 0.7978845608028654  # sqrt(2/pi)
    return 0.5 * x * (1.0 + jnp.tanh(c * (x + 0.044715 * x * x * x)))


def _compute(x, wd1_ref, bd1_ref, wd2_ref, bd2_ref, whc_ref, bhp_ref,
             wp1_ref, bp1_ref, wp2_ref, bp2_ref, dot_dtype):
    """Core math on one (tm, Hp) token tile.  Returns f32 (tm, Hp)."""
    Hp = x.shape[-1]
    xc = x.astype(dot_dtype)

    # ---- operation detector: Linear -> GELU -> Linear(H, 8 padded to 128) ---
    d1 = _gelu(
        jnp.dot(xc, wd1_ref[...], preferred_element_type=jnp.float32)
        + bd1_ref[...])
    logits = (jnp.dot(d1.astype(dot_dtype), wd2_ref[...],
                      preferred_element_type=jnp.float32)
              + bd2_ref[...])                                  # (tm, 128)

    # ---- safe softmax (max-subtracted); padded lanes have -1e30 bias -> 0 ---
    m = jnp.max(logits, axis=-1, keepdims=True)
    e = jnp.exp(logits - m)
    op_w = e * pl.reciprocal(jnp.sum(e, axis=-1, keepdims=True), approx=True)

    # ---- 8 operation handlers: stream static slices of the packed weight ----
    # bias term first: sum_i op_w[:, i] * b_i  ==  op_w @ bh (small f32 matmul)
    combined = jnp.dot(op_w, bhp_ref[...], preferred_element_type=jnp.float32)
    # per-op (tm,Hp)x(Hp,Hp) matmuls accumulated in place -> no (tm, 8*Hp)
    # f32 intermediate ever materializes (static ref slices are free).
    for i in range(NUM_OPS):
        h_i = jnp.dot(xc, whc_ref[:, i * Hp:(i + 1) * Hp],
                      preferred_element_type=jnp.float32)
        combined = combined + op_w[:, i:i + 1] * h_i

    # ---- precision integration: Linear -> GELU -> Linear --------------------
    p1 = _gelu(
        jnp.dot(combined.astype(dot_dtype), wp1_ref[...],
                preferred_element_type=jnp.float32)
        + bp1_ref[...])
    enhanced = (jnp.dot(p1.astype(dot_dtype), wp2_ref[...],
                        preferred_element_type=jnp.float32)
                + bp2_ref[...])
    return enhanced


def _kernel_nomask(x_ref, wd1_ref, bd1_ref, wd2_ref, bd2_ref, whc_ref, bhp_ref,
                   wp1_ref, bp1_ref, wp2_ref, bp2_ref, out_ref, *, dot_dtype):
    out_ref[...] = _compute(x_ref[...], wd1_ref, bd1_ref, wd2_ref, bd2_ref,
                            whc_ref, bhp_ref, wp1_ref, bp1_ref, wp2_ref,
                            bp2_ref, dot_dtype)


def _kernel_masked(x_ref, mask_ref, wd1_ref, bd1_ref, wd2_ref, bd2_ref,
                   whc_ref, bhp_ref, wp1_ref, bp1_ref, wp2_ref, bp2_ref,
                   out_ref, *, dot_dtype):
    enhanced = _compute(x_ref[...], wd1_ref, bd1_ref, wd2_ref, bd2_ref,
                        whc_ref, bhp_ref, wp1_ref, bp1_ref, wp2_ref,
                        bp2_ref, dot_dtype)
    out_ref[...] = enhanced * mask_ref[...]


# --------------------------------------------------------------------------- #
# One-time parameter packing (do NOT call per forward pass)                    #
# --------------------------------------------------------------------------- #
def prepack_params(params, use_bf16_matmul=True):
    """Pad / transpose / concatenate raw parameters once.

    Returns a dict consumed by enhanced_math_reasoning.  The expensive
    (8,H,H) -> (Hp, 8*Hp) handler repack and all dtype casts happen here,
    not on the per-call path.
    """
    (wd1, bd1, wd2, bd2, wh, bh, wp1, bp1, wp2, bp2) = params
    H = wd1.shape[0]
    Hp = _round_up(H, 128)                 # lane-dense hidden dim
    dot_dtype = jnp.bfloat16 if use_bf16_matmul else jnp.float32

    def pad2(w, r, c):
        w = w.astype(jnp.float32)
        return jnp.pad(w, ((0, r - w.shape[0]), (0, c - w.shape[1])))

    wd1p = pad2(wd1, Hp, Hp).astype(dot_dtype)
    bd1p = pad2(bd1, 1, Hp)                                     # stays f32
    wd2p = pad2(wd2, Hp, OPS_PAD).astype(dot_dtype)
    # padded logit lanes get a -1e30 bias so their softmax weight is exactly 0
    bd2p = jnp.full((1, OPS_PAD), _NEG_BIG, jnp.float32)
    bd2p = bd2p.at[:, :NUM_OPS].set(bd2.reshape(1, NUM_OPS).astype(jnp.float32))
    # 8 handler weights -> one (Hp, 8*Hp) matrix (output axes concatenated)
    whp = jnp.pad(wh.astype(jnp.float32), ((0, 0), (0, Hp - H), (0, Hp - H)))
    whc = jnp.transpose(whp, (1, 0, 2)).reshape(Hp, NUM_OPS * Hp)
    whc = whc.astype(dot_dtype)
    bhp = jnp.zeros((OPS_PAD, Hp), jnp.float32)
    bhp = bhp.at[:NUM_OPS, :H].set(bh.astype(jnp.float32))
    wp1p = pad2(wp1, Hp, Hp).astype(dot_dtype)
    bp1p = pad2(bp1, 1, Hp)
    wp2p = pad2(wp2, Hp, Hp).astype(dot_dtype)
    bp2p = pad2(bp2, 1, Hp)

    weights = tuple(jax.block_until_ready(w) for w in
                    (wd1p, bd1p, wd2p, bd2p, whc, bhp, wp1p, bp1p, wp2p, bp2p))
    return {"weights": weights, "H": H, "Hp": Hp,
            "dot_dtype": dot_dtype, "use_bf16_matmul": use_bf16_matmul}


def _resident_spec(arr):
    # Constant block index: the weight is DMA'd once and stays resident across
    # the whole token grid; single-buffer it (no useless second pipeline buf).
    try:
        return pl.BlockSpec(arr.shape, lambda i: (0, 0),
                            pipeline_mode=pl.Buffered(1))
    except Exception:
        return pl.BlockSpec(arr.shape, lambda i: (0, 0))


def _choose_tm(M, Hp, weight_bytes, x_itemsize, vmem_cap, tm=None):
    if tm is None:
        tm = 512 if Hp <= 256 else 256
    tm = min(tm, max(8, _round_up(M, 8)))      # don't pad tiny inputs to 256
    budget = int(0.85 * vmem_cap) - weight_bytes - (8 << 20)

    def step_bytes(t):
        # x/out tiles (double-buffered) + live f32 intermediates headroom
        return 2 * t * Hp * (x_itemsize + 4) + 8 * t * Hp * 4

    while tm > 64 and step_bytes(tm) > budget:
        tm //= 2
    return max(8, _round_up(tm, 8))


def enhanced_math_reasoning(hidden_states, packed, attention_mask=None,
                            tm=None):
    """hidden_states: (B, S, H) f32; packed: output of prepack_params;
    attention_mask: (B, S) or None."""
    B, S, H = hidden_states.shape
    assert H == packed["H"], "packed params were built for a different H"
    weights = packed["weights"]
    Hp = packed["Hp"]
    dot_dtype = packed["dot_dtype"]
    M = B * S

    x_dtype = dot_dtype if packed["use_bf16_matmul"] else jnp.float32
    x_itemsize = jnp.dtype(x_dtype).itemsize

    weight_bytes = sum(int(w.size) * w.dtype.itemsize for w in weights)
    vmem_cap = _vmem_capacity_bytes()

    tm = _choose_tm(M, Hp, weight_bytes, x_itemsize, vmem_cap, tm)
    Mp = _round_up(M, tm)

    # ---- activations: cast (bf16 when matmuls are bf16), pad only if needed -
    x = hidden_states.reshape(M, H).astype(x_dtype)
    if (Mp, Hp) != (M, H):
        x = jnp.pad(x, ((0, Mp - M), (0, Hp - H)))

    tok_in_spec = pl.BlockSpec((tm, Hp), lambda i: (i, 0))
    tok_out_spec = pl.BlockSpec((tm, Hp), lambda i: (i, 0))
    weight_specs = [_resident_spec(w) for w in weights]

    # ---- VMEM budget: resident weights (single-buffered) + streamed tiles ---
    act_bytes = 2 * tm * Hp * (x_itemsize + 4)      # x / out tiles, 2-deep
    inter_bytes = 8 * tm * Hp * 4                   # live f32 intermediates
    vmem_limit = weight_bytes + act_bytes + inter_bytes + (8 << 20)
    vmem_limit = int(min(max(vmem_limit, 32 << 20), int(0.85 * vmem_cap)))

    compiler_params = pltpu.CompilerParams(
        dimension_semantics=("parallel",),
        vmem_limit_bytes=vmem_limit)

    if attention_mask is None:
        kernel = functools.partial(_kernel_nomask, dot_dtype=dot_dtype)
        out = pl.pallas_call(
            kernel,
            out_shape=jax.ShapeDtypeStruct((Mp, Hp), jnp.float32),
            grid=(Mp // tm,),
            in_specs=[tok_in_spec] + weight_specs,
            out_specs=tok_out_spec,
            compiler_params=compiler_params,
        )(x, *weights)
    else:
        mask = attention_mask.reshape(M, 1).astype(jnp.float32)
        if Mp != M:
            mask = jnp.pad(mask, ((0, Mp - M), (0, 0)))
        mask_spec = pl.BlockSpec((tm, 1), lambda i: (i, 0))
        kernel = functools.partial(_kernel_masked, dot_dtype=dot_dtype)
        out = pl.pallas_call(
            kernel,
            out_shape=jax.ShapeDtypeStruct((Mp, Hp), jnp.float32),
            grid=(Mp // tm,),
            in_specs=[tok_in_spec, mask_spec] + weight_specs,
            out_specs=tok_out_spec,
            compiler_params=compiler_params,
        )(x, mask, *weights)

    return out[:M, :H].reshape(B, S, H)


def init_params(key, hidden_size):
    """Deterministic synthetic parameters (shapes per module __init__)."""
    H = hidden_size
    ks = jax.random.split(key, 10)
    scale = 1.0 / jnp.sqrt(jnp.float32(H))

    def lin(k, fan_in, fan_out):
        return jax.random.normal(k, (fan_in, fan_out), jnp.float32) * scale

    wd1 = lin(ks[0], H, H)                                   # detector Linear 1
    bd1 = jax.random.normal(ks[1], (1, H), jnp.float32) * 0.01
    wd2 = lin(ks[2], H, NUM_OPS)                             # detector Linear 2
    bd2 = jax.random.normal(ks[3], (1, NUM_OPS), jnp.float32) * 0.01
    wh = jax.random.normal(ks[4], (NUM_OPS, H, H), jnp.float32) * scale
    bh = jax.random.normal(ks[5], (NUM_OPS, H), jnp.float32) * 0.01
    wp1 = lin(ks[6], H, H)                                   # integration Lin 1
    bp1 = jax.random.normal(ks[7], (1, H), jnp.float32) * 0.01
    wp2 = lin(ks[8], H, H)                                   # integration Lin 2
    bp2 = jax.random.normal(ks[9], (1, H), jnp.float32) * 0.01
    return (wd1, bd1, wd2, bd2, wh, bh, wp1, bp1, wp2, bp2)


if __name__ == "__main__":
    B, S, H = 2, 8, 32
    key = jax.random.PRNGKey(0)
    k_x, k_p, k_m = jax.random.split(key, 3)

    hidden_states = jax.random.normal(k_x, (B, S, H), jnp.float32)
    params = init_params(k_p, H)

    # one-time weight packing (hoisted out of the per-call path)
    packed = prepack_params(params, use_bf16_matmul=True)

    # no-mask path (mask-free kernel variant)
    out = enhanced_math_reasoning(hidden_states, packed, attention_mask=None)
    out = jax.block_until_ready(out)
    assert out.shape == (B, S, H)
    assert bool(jnp.all(jnp.isfinite(out)))

    # masked path
    mask = (jax.random.uniform(k_m, (B, S)) > 0.3).astype(jnp.float32)
    out_m = enhanced_math_reasoning(hidden_states, packed, attention_mask=mask)
    out_m = jax.block_until_ready(out_m)
    assert out_m.shape == (B, S, H)
    assert bool(jnp.all(jnp.isfinite(out_m)))
    # masked rows must be exactly zero
    assert bool(jnp.all(jnp.where(mask[..., None] == 0.0, out_m == 0.0, True)))

    print("KERNEL_OK")
</pallas_src>

<mosaic_0001>
module attributes {stable_mosaic.version = 11 : i64} {
  func.func @_kernel_nomask(%arg0: i32, %arg1: memref<16x128xbf16, #tpu.memory_space<vmem>>, %arg2: memref<128x128xbf16, #tpu.memory_space<vmem>>, %arg3: memref<1x128xf32, #tpu.memory_space<vmem>>, %arg4: memref<128x128xbf16, #tpu.memory_space<vmem>>, %arg5: memref<1x128xf32, #tpu.memory_space<vmem>>, %arg6: memref<128x1024xbf16, #tpu.memory_space<vmem>>, %arg7: memref<128x128xf32, #tpu.memory_space<vmem>>, %arg8: memref<128x128xbf16, #tpu.memory_space<vmem>>, %arg9: memref<1x128xf32, #tpu.memory_space<vmem>>, %arg10: memref<128x128xbf16, #tpu.memory_space<vmem>>, %arg11: memref<1x128xf32, #tpu.memory_space<vmem>>, %arg12: memref<16x128xf32, #tpu.memory_space<vmem>>) attributes {dimension_semantics = [#tpu.dimension_semantics<parallel>], iteration_bounds = array<i64: 1>, scalar_prefetch = 0 : i64, scratch_operands = 0 : i64, tpu.core_type = #tpu.core_type<tc>, window_params = [{transform_indices = @transform_0, window_bounds = array<i64: 16, 128>}, {pipeline_mode = #tpu.pipeline_mode<synchronous>, transform_indices = @transform_1, window_bounds = array<i64: 128, 128>}, {pipeline_mode = #tpu.pipeline_mode<synchronous>, transform_indices = @transform_2, window_bounds = array<i64: 1, 128>}, {pipeline_mode = #tpu.pipeline_mode<synchronous>, transform_indices = @transform_3, window_bounds = array<i64: 128, 128>}, {pipeline_mode = #tpu.pipeline_mode<synchronous>, transform_indices = @transform_4, window_bounds = array<i64: 1, 128>}, {pipeline_mode = #tpu.pipeline_mode<synchronous>, transform_indices = @transform_5, window_bounds = array<i64: 128, 1024>}, {pipeline_mode = #tpu.pipeline_mode<synchronous>, transform_indices = @transform_6, window_bounds = array<i64: 128, 128>}, {pipeline_mode = #tpu.pipeline_mode<synchronous>, transform_indices = @transform_7, window_bounds = array<i64: 128, 128>}, {pipeline_mode = #tpu.pipeline_mode<synchronous>, transform_indices = @transform_8, window_bounds = array<i64: 1, 128>}, {pipeline_mode = #tpu.pipeline_mode<synchronous>, transform_indices = @transform_9, window_bounds = array<i64: 128, 128>}, {pipeline_mode = #tpu.pipeline_mode<synchronous>, transform_indices = @transform_10, window_bounds = array<i64: 1, 128>}, {transform_indices = @transform_11, window_bounds = array<i64: 16, 128>}]} {
    %c0 = arith.constant 0 : index
    %c0_0 = arith.constant 0 : index
    %0 = vector.load %arg1[%c0, %c0_0] : memref<16x128xbf16, #tpu.memory_space<vmem>>, vector<16x128xbf16>
    %c0_1 = arith.constant 0 : index
    %c0_2 = arith.constant 0 : index
    %1 = vector.load %arg2[%c0_1, %c0_2] : memref<128x128xbf16, #tpu.memory_space<vmem>>, vector<128x128xbf16>
    %cst = arith.constant dense<0.000000e+00> : vector<16x128xf32>
    %2 = tpu.matmul %0, %1, %cst {dimension_numbers = #tpu.dot_dimension_numbers<[1], [0], [0], [1], [0, 0, 1, 1], [], []>} : vector<16x128xbf16>, vector<128x128xbf16>, vector<16x128xf32> -> vector<16x128xf32>
    %c0_3 = arith.constant 0 : index
    %c0_4 = arith.constant 0 : index
    %3 = vector.load %arg3[%c0_3, %c0_4] : memref<1x128xf32, #tpu.memory_space<vmem>>, vector<1x128xf32>
    %4 = vector.broadcast %3 : vector<1x128xf32> to vector<16x128xf32>
    %5 = arith.addf %2, %4 : vector<16x128xf32>
    %cst_5 = arith.constant 5.000000e-01 : f32
    %6 = vector.broadcast %cst_5 : f32 to vector<16x128xf32>
    %7 = arith.mulf %6, %5 : vector<16x128xf32>
    %cst_6 = arith.constant 4.471500e-02 : f32
    %8 = vector.broadcast %cst_6 : f32 to vector<16x128xf32>
    %9 = arith.mulf %8, %5 : vector<16x128xf32>
    %10 = arith.mulf %9, %5 : vector<16x128xf32>
    %11 = arith.mulf %10, %5 : vector<16x128xf32>
    %12 = arith.addf %5, %11 : vector<16x128xf32>
    %cst_7 = arith.constant 0.797884583 : f32
    %13 = vector.broadcast %cst_7 : f32 to vector<16x128xf32>
    %14 = arith.mulf %13, %12 : vector<16x128xf32>
    %15 = math.tanh %14 : vector<16x128xf32>
    %cst_8 = arith.constant 1.000000e+00 : f32
    %16 = vector.broadcast %cst_8 : f32 to vector<16x128xf32>
    %17 = arith.addf %16, %15 : vector<16x128xf32>
    %18 = arith.mulf %7, %17 : vector<16x128xf32>
    %19 = arith.truncf %18 : vector<16x128xf32> to vector<16x128xbf16>
    %c0_9 = arith.constant 0 : index
    %c0_10 = arith.constant 0 : index
    %20 = vector.load %arg4[%c0_9, %c0_10] : memref<128x128xbf16, #tpu.memory_space<vmem>>, vector<128x128xbf16>
    %cst_11 = arith.constant dense<0.000000e+00> : vector<16x128xf32>
    %21 = tpu.matmul %19, %20, %cst_11 {dimension_numbers = #tpu.dot_dimension_numbers<[1], [0], [0], [1], [0, 0, 1, 1], [], []>} : vector<16x128xbf16>, vector<128x128xbf16>, vector<16x128xf32> -> vector<16x128xf32>
    %c0_12 = arith.constant 0 : index
    %c0_13 = arith.constant 0 : index
    %22 = vector.load %arg5[%c0_12, %c0_13] : memref<1x128xf32, #tpu.memory_space<vmem>>, vector<1x128xf32>
    %23 = vector.broadcast %22 : vector<1x128xf32> to vector<16x128xf32>
    %24 = arith.addf %21, %23 : vector<16x128xf32>
    %cst_14 = arith.constant dense<0xFF800000> : vector<16xf32>
    %25 = vector.multi_reduction <maximumf>, %24, %cst_14 [1] : vector<16x128xf32> to vector<16xf32>
    %26 = vector.shape_cast %25 : vector<16xf32> to vector<16x1xf32>
    %27 = vector.broadcast %26 : vector<16x1xf32> to vector<16x128xf32>
    %28 = arith.subf %24, %27 : vector<16x128xf32>
    %29 = math.exp %28 : vector<16x128xf32>
    %cst_15 = arith.constant dense<0.000000e+00> : vector<16xf32>
    %30 = vector.multi_reduction <add>, %29, %cst_15 [1] : vector<16x128xf32> to vector<16xf32>
    %31 = vector.shape_cast %30 : vector<16xf32> to vector<16x1xf32>
    %32 = tpu.reciprocal %31 {approx = true} : vector<16x1xf32> -> vector<16x1xf32>
    %33 = vector.broadcast %32 : vector<16x1xf32> to vector<16x128xf32>
    %34 = arith.mulf %29, %33 : vector<16x128xf32>
    %c0_16 = arith.constant 0 : index
    %c0_17 = arith.constant 0 : index
    %35 = vector.load %arg7[%c0_16, %c0_17] : memref<128x128xf32, #tpu.memory_space<vmem>>, vector<128x128xf32>
    %cst_18 = arith.constant dense<0.000000e+00> : vector<16x128xf32>
    %36 = tpu.matmul %34, %35, %cst_18 {dimension_numbers = #tpu.dot_dimension_numbers<[1], [0], [0], [1], [0, 0, 1, 1], [], []>} : vector<16x128xf32>, vector<128x128xf32>, vector<16x128xf32> -> vector<16x128xf32>
    %c0_19 = arith.constant 0 : index
    %c0_20 = arith.constant 0 : index
    %37 = vector.load %arg6[%c0_19, %c0_20] : memref<128x1024xbf16, #tpu.memory_space<vmem>>, vector<128x128xbf16>
    %cst_21 = arith.constant dense<0.000000e+00> : vector<16x128xf32>
    %38 = tpu.matmul %0, %37, %cst_21 {dimension_numbers = #tpu.dot_dimension_numbers<[1], [0], [0], [1], [0, 0, 1, 1], [], []>} : vector<16x128xbf16>, vector<128x128xbf16>, vector<16x128xf32> -> vector<16x128xf32>
    %39 = vector.extract_strided_slice %34 {offsets = [0, 0], sizes = [16, 1], strides = [1, 1]} : vector<16x128xf32> to vector<16x1xf32>
    %40 = vector.broadcast %39 : vector<16x1xf32> to vector<16x128xf32>
    %41 = arith.mulf %40, %38 : vector<16x128xf32>
    %42 = arith.addf %36, %41 : vector<16x128xf32>
    %c0_22 = arith.constant 0 : index
    %c128 = arith.constant 128 : index
    %43 = vector.load %arg6[%c0_22, %c128] : memref<128x1024xbf16, #tpu.memory_space<vmem>>, vector<128x128xbf16>
    %cst_23 = arith.constant dense<0.000000e+00> : vector<16x128xf32>
    %44 = tpu.matmul %0, %43, %cst_23 {dimension_numbers = #tpu.dot_dimension_numbers<[1], [0], [0], [1], [0, 0, 1, 1], [], []>} : vector<16x128xbf16>, vector<128x128xbf16>, vector<16x128xf32> -> vector<16x128xf32>
    %45 = vector.extract_strided_slice %34 {offsets = [0, 1], sizes = [16, 1], strides = [1, 1]} : vector<16x128xf32> to vector<16x1xf32>
    %46 = vector.broadcast %45 : vector<16x1xf32> to vector<16x128xf32>
    %47 = arith.mulf %46, %44 : vector<16x128xf32>
    %48 = arith.addf %42, %47 : vector<16x128xf32>
    %c0_24 = arith.constant 0 : index
    %c256 = arith.constant 256 : index
    %49 = vector.load %arg6[%c0_24, %c256] : memref<128x1024xbf16, #tpu.memory_space<vmem>>, vector<128x128xbf16>
    %cst_25 = arith.constant dense<0.000000e+00> : vector<16x128xf32>
    %50 = tpu.matmul %0, %49, %cst_25 {dimension_numbers = #tpu.dot_dimension_numbers<[1], [0], [0], [1], [0, 0, 1, 1], [], []>} : vector<16x128xbf16>, vector<128x128xbf16>, vector<16x128xf32> -> vector<16x128xf32>
    %51 = vector.extract_strided_slice %34 {offsets = [0, 2], sizes = [16, 1], strides = [1, 1]} : vector<16x128xf32> to vector<16x1xf32>
    %52 = vector.broadcast %51 : vector<16x1xf32> to vector<16x128xf32>
    %53 = arith.mulf %52, %50 : vector<16x128xf32>
    %54 = arith.addf %48, %53 : vector<16x128xf32>
    %c0_26 = arith.constant 0 : index
    %c384 = arith.constant 384 : index
    %55 = vector.load %arg6[%c0_26, %c384] : memref<128x1024xbf16, #tpu.memory_space<vmem>>, vector<128x128xbf16>
    %cst_27 = arith.constant dense<0.000000e+00> : vector<16x128xf32>
    %56 = tpu.matmul %0, %55, %cst_27 {dimension_numbers = #tpu.dot_dimension_numbers<[1], [0], [0], [1], [0, 0, 1, 1], [], []>} : vector<16x128xbf16>, vector<128x128xbf16>, vector<16x128xf32> -> vector<16x128xf32>
    %57 = vector.extract_strided_slice %34 {offsets = [0, 3], sizes = [16, 1], strides = [1, 1]} : vector<16x128xf32> to vector<16x1xf32>
    %58 = vector.broadcast %57 : vector<16x1xf32> to vector<16x128xf32>
    %59 = arith.mulf %58, %56 : vector<16x128xf32>
    %60 = arith.addf %54, %59 : vector<16x128xf32>
    %c0_28 = arith.constant 0 : index
    %c512 = arith.constant 512 : index
    %61 = vector.load %arg6[%c0_28, %c512] : memref<128x1024xbf16, #tpu.memory_space<vmem>>, vector<128x128xbf16>
    %cst_29 = arith.constant dense<0.000000e+00> : vector<16x128xf32>
    %62 = tpu.matmul %0, %61, %cst_29 {dimension_numbers = #tpu.dot_dimension_numbers<[1], [0], [0], [1], [0, 0, 1, 1], [], []>} : vector<16x128xbf16>, vector<128x128xbf16>, vector<16x128xf32> -> vector<16x128xf32>
    %63 = vector.extract_strided_slice %34 {offsets = [0, 4], sizes = [16, 1], strides = [1, 1]} : vector<16x128xf32> to vector<16x1xf32>
    %64 = vector.broadcast %63 : vector<16x1xf32> to vector<16x128xf32>
    %65 = arith.mulf %64, %62 : vector<16x128xf32>
    %66 = arith.addf %60, %65 : vector<16x128xf32>
    %c0_30 = arith.constant 0 : index
    %c640 = arith.constant 640 : index
    %67 = vector.load %arg6[%c0_30, %c640] : memref<128x1024xbf16, #tpu.memory_space<vmem>>, vector<128x128xbf16>
    %cst_31 = arith.constant dense<0.000000e+00> : vector<16x128xf32>
    %68 = tpu.matmul %0, %67, %cst_31 {dimension_numbers = #tpu.dot_dimension_numbers<[1], [0], [0], [1], [0, 0, 1, 1], [], []>} : vector<16x128xbf16>, vector<128x128xbf16>, vector<16x128xf32> -> vector<16x128xf32>
    %69 = vector.extract_strided_slice %34 {offsets = [0, 5], sizes = [16, 1], strides = [1, 1]} : vector<16x128xf32> to vector<16x1xf32>
    %70 = vector.broadcast %69 : vector<16x1xf32> to vector<16x128xf32>
    %71 = arith.mulf %70, %68 : vector<16x128xf32>
    %72 = arith.addf %66, %71 : vector<16x128xf32>
    %c0_32 = arith.constant 0 : index
    %c768 = arith.constant 768 : index
    %73 = vector.load %arg6[%c0_32, %c768] : memref<128x1024xbf16, #tpu.memory_space<vmem>>, vector<128x128xbf16>
    %cst_33 = arith.constant dense<0.000000e+00> : vector<16x128xf32>
    %74 = tpu.matmul %0, %73, %cst_33 {dimension_numbers = #tpu.dot_dimension_numbers<[1], [0], [0], [1], [0, 0, 1, 1], [], []>} : vector<16x128xbf16>, vector<128x128xbf16>, vector<16x128xf32> -> vector<16x128xf32>
    %75 = vector.extract_strided_slice %34 {offsets = [0, 6], sizes = [16, 1], strides = [1, 1]} : vector<16x128xf32> to vector<16x1xf32>
    %76 = vector.broadcast %75 : vector<16x1xf32> to vector<16x128xf32>
    %77 = arith.mulf %76, %74 : vector<16x128xf32>
    %78 = arith.addf %72, %77 : vector<16x128xf32>
    %c0_34 = arith.constant 0 : index
    %c896 = arith.constant 896 : index
    %79 = vector.load %arg6[%c0_34, %c896] : memref<128x1024xbf16, #tpu.memory_space<vmem>>, vector<128x128xbf16>
    %cst_35 = arith.constant dense<0.000000e+00> : vector<16x128xf32>
    %80 = tpu.matmul %0, %79, %cst_35 {dimension_numbers = #tpu.dot_dimension_numbers<[1], [0], [0], [1], [0, 0, 1, 1], [], []>} : vector<16x128xbf16>, vector<128x128xbf16>, vector<16x128xf32> -> vector<16x128xf32>
    %81 = vector.extract_strided_slice %34 {offsets = [0, 7], sizes = [16, 1], strides = [1, 1]} : vector<16x128xf32> to vector<16x1xf32>
    %82 = vector.broadcast %81 : vector<16x1xf32> to vector<16x128xf32>
    %83 = arith.mulf %82, %80 : vector<16x128xf32>
    %84 = arith.addf %78, %83 : vector<16x128xf32>
    %85 = arith.truncf %84 : vector<16x128xf32> to vector<16x128xbf16>
    %c0_36 = arith.constant 0 : index
    %c0_37 = arith.constant 0 : index
    %86 = vector.load %arg8[%c0_36, %c0_37] : memref<128x128xbf16, #tpu.memory_space<vmem>>, vector<128x128xbf16>
    %cst_38 = arith.constant dense<0.000000e+00> : vector<16x128xf32>
    %87 = tpu.matmul %85, %86, %cst_38 {dimension_numbers = #tpu.dot_dimension_numbers<[1], [0], [0], [1], [0, 0, 1, 1], [], []>} : vector<16x128xbf16>, vector<128x128xbf16>, vector<16x128xf32> -> vector<16x128xf32>
    %c0_39 = arith.constant 0 : index
    %c0_40 = arith.constant 0 : index
    %88 = vector.load %arg9[%c0_39, %c0_40] : memref<1x128xf32, #tpu.memory_space<vmem>>, vector<1x128xf32>
    %89 = vector.broadcast %88 : vector<1x128xf32> to vector<16x128xf32>
    %90 = arith.addf %87, %89 : vector<16x128xf32>
    %cst_41 = arith.constant 5.000000e-01 : f32
    %91 = vector.broadcast %cst_41 : f32 to vector<16x128xf32>
    %92 = arith.mulf %91, %90 : vector<16x128xf32>
    %cst_42 = arith.constant 4.471500e-02 : f32
    %93 = vector.broadcast %cst_42 : f32 to vector<16x128xf32>
    %94 = arith.mulf %93, %90 : vector<16x128xf32>
    %95 = arith.mulf %94, %90 : vector<16x128xf32>
    %96 = arith.mulf %95, %90 : vector<16x128xf32>
    %97 = arith.addf %90, %96 : vector<16x128xf32>
    %cst_43 = arith.constant 0.797884583 : f32
    %98 = vector.broadcast %cst_43 : f32 to vector<16x128xf32>
    %99 = arith.mulf %98, %97 : vector<16x128xf32>
    %100 = math.tanh %99 : vector<16x128xf32>
    %cst_44 = arith.constant 1.000000e+00 : f32
    %101 = vector.broadcast %cst_44 : f32 to vector<16x128xf32>
    %102 = arith.addf %101, %100 : vector<16x128xf32>
    %103 = arith.mulf %92, %102 : vector<16x128xf32>
    %104 = arith.truncf %103 : vector<16x128xf32> to vector<16x128xbf16>
    %c0_45 = arith.constant 0 : index
    %c0_46 = arith.constant 0 : index
    %105 = vector.load %arg10[%c0_45, %c0_46] : memref<128x128xbf16, #tpu.memory_space<vmem>>, vector<128x128xbf16>
    %cst_47 = arith.constant dense<0.000000e+00> : vector<16x128xf32>
    %106 = tpu.matmul %104, %105, %cst_47 {dimension_numbers = #tpu.dot_dimension_numbers<[1], [0], [0], [1], [0, 0, 1, 1], [], []>} : vector<16x128xbf16>, vector<128x128xbf16>, vector<16x128xf32> -> vector<16x128xf32>
    %c0_48 = arith.constant 0 : index
    %c0_49 = arith.constant 0 : index
    %107 = vector.load %arg11[%c0_48, %c0_49] : memref<1x128xf32, #tpu.memory_space<vmem>>, vector<1x128xf32>
    %108 = vector.broadcast %107 : vector<1x128xf32> to vector<16x128xf32>
    %109 = arith.addf %106, %108 : vector<16x128xf32>
    %c0_50 = arith.constant 0 : index
    %c0_51 = arith.constant 0 : index
    %110 = vector.load %arg12[%c0_50, %c0_51] : memref<16x128xf32, #tpu.memory_space<vmem>>, vector<16x128xf32>
    tpu.vector_store %arg12[%c0_50, %c0_51], %109 {strides = array<i32>} : memref<16x128xf32, #tpu.memory_space<vmem>>, vector<16x128xf32>,
    return
  }
  func.func @transform_0(%arg0: i32) -> (i32, i32) {
    %c0_i32 = arith.constant 0 : i32
    %c0_i32_0 = arith.constant 0 : i32
    return %arg0, %c0_i32 : i32, i32
  }
  func.func @transform_1(%arg0: i32) -> (i32, i32) {
    %c0_i32 = arith.constant 0 : i32
    %c0_i32_0 = arith.constant 0 : i32
    %c0_i32_1 = arith.constant 0 : i32
    return %c0_i32, %c0_i32_0 : i32, i32
  }
  func.func @transform_2(%arg0: i32) -> (i32, i32) {
    %c0_i32 = arith.constant 0 : i32
    %c0_i32_0 = arith.constant 0 : i32
    %c0_i32_1 = arith.constant 0 : i32
    return %c0_i32, %c0_i32_0 : i32, i32
  }
  func.func @transform_3(%arg0: i32) -> (i32, i32) {
    %c0_i32 = arith.constant 0 : i32
    %c0_i32_0 = arith.constant 0 : i32
    %c0_i32_1 = arith.constant 0 : i32
    return %c0_i32, %c0_i32_0 : i32, i32
  }
  func.func @transform_4(%arg0: i32) -> (i32, i32) {
    %c0_i32 = arith.constant 0 : i32
    %c0_i32_0 = arith.constant 0 : i32
    %c0_i32_1 = arith.constant 0 : i32
    return %c0_i32, %c0_i32_0 : i32, i32
  }
  func.func @transform_5(%arg0: i32) -> (i32, i32) {
    %c0_i32 = arith.constant 0 : i32
    %c0_i32_0 = arith.constant 0 : i32
    %c0_i32_1 = arith.constant 0 : i32
    return %c0_i32, %c0_i32_0 : i32, i32
  }
  func.func @transform_6(%arg0: i32) -> (i32, i32) {
    %c0_i32 = arith.constant 0 : i32
    %c0_i32_0 = arith.constant 0 : i32
    %c0_i32_1 = arith.constant 0 : i32
    return %c0_i32, %c0_i32_0 : i32, i32
  }
  func.func @transform_7(%arg0: i32) -> (i32, i32) {
    %c0_i32 = arith.constant 0 : i32
    %c0_i32_0 = arith.constant 0 : i32
    %c0_i32_1 = arith.constant 0 : i32
    return %c0_i32, %c0_i32_0 : i32, i32
  }
  func.func @transform_8(%arg0: i32) -> (i32, i32) {
    %c0_i32 = arith.constant 0 : i32
    %c0_i32_0 = arith.constant 0 : i32
    %c0_i32_1 = arith.constant 0 : i32
    return %c0_i32, %c0_i32_0 : i32, i32
  }
  func.func @transform_9(%arg0: i32) -> (i32, i32) {
    %c0_i32 = arith.constant 0 : i32
    %c0_i32_0 = arith.constant 0 : i32
    %c0_i32_1 = arith.constant 0 : i32
    return %c0_i32, %c0_i32_0 : i32, i32
  }
  func.func @transform_10(%arg0: i32) -> (i32, i32) {
    %c0_i32 = arith.constant 0 : i32
    %c0_i32_0 = arith.constant 0 : i32
    %c0_i32_1 = arith.constant 0 : i32
    return %c0_i32, %c0_i32_0 : i32, i32
  }
  func.func @transform_11(%arg0: i32) -> (i32, i32) {
    %c0_i32 = arith.constant 0 : i32
    %c0_i32_0 = arith.constant 0 : i32
    return %arg0, %c0_i32 : i32, i32
  }
}

</mosaic_0001>

<llo_original>
// kernel: tpu_custom_call.1
$region0: #{tpu_custom_call.1}
  #allocation0 [shape = 'u32[]', space=smem, size = 0x4, offset = 0x4, fixed_abs, tag = 'smem constant byte address 0x4 - core index']
  #allocation1 [shape = 'u32[72,128]{1,0:T(1,128)}', space=vmem, size = 0x9000, scoped, tag = 'internal scratch']
  %s0 = inlined_call_operand.hbm [shape: bf16[16,128], index: 0, kind: input, shape index: {}]
  %s1 = inlined_call_operand.hbm [shape: bf16[128,128], index: 1, kind: input, shape index: {}]
  %s2 = inlined_call_operand.vmem [shape: f32[1,128], index: 2, kind: input, shape index: {}]
  %s3 = inlined_call_operand.hbm [shape: bf16[128,128], index: 3, kind: input, shape index: {}]
  %s4 = inlined_call_operand.vmem [shape: f32[1,128], index: 4, kind: input, shape index: {}]
  %s5 = inlined_call_operand.hbm [shape: bf16[128,1024], index: 5, kind: input, shape index: {}]
  %s6 = inlined_call_operand.hbm [shape: f32[128,128], index: 6, kind: input, shape index: {}]
  %s7 = inlined_call_operand.hbm [shape: bf16[128,128], index: 7, kind: input, shape index: {}]
  %s8 = inlined_call_operand.vmem [shape: f32[1,128], index: 8, kind: input, shape index: {}]
  %s9 = inlined_call_operand.hbm [shape: bf16[128,128], index: 9, kind: input, shape index: {}]
  %s10 = inlined_call_operand.vmem [shape: f32[1,128], index: 10, kind: input, shape index: {}]
  %s11 = inlined_call_operand.hbm [shape: f32[16,128], index: 11, kind: output, shape index: {}]
  %s12 = sld [smem:[#allocation0]]
  $region82: #{tpu_custom_call.1} parent=0
    _
  %s14 = ssub.s32 1, %s12
  %s15 = scalar_select 0, %s14, %s12
  $region1: #{tpu_custom_call.1} parent=0
    #allocation2 [shape = 'u8[4096]{0}', space=vmem, size = 0x1000, scoped, tag = 'input window, operand 0, single buffered']
    #allocation3 [shape = 's32[1]{0}', space=sflag, size = 0x4, scoped, tag = 'scoped memory for tpu_custom_call.1']
    #allocation4 [shape = 's32[1]{0}', space=sflag, size = 0x4, scoped, tag = 'scoped memory for tpu_custom_call.1']
    #allocation5 [shape = 'u8[32768]{0}', space=vmem, size = 0x8000, scoped, tag = 'input window, operand 1, single buffered']
    #allocation6 [shape = 's32[1]{0}', space=sflag, size = 0x4, scoped, tag = 'scoped memory for tpu_custom_call.1']
    #allocation7 [shape = 'u8[32768]{0}', space=vmem, size = 0x8000, scoped, tag = 'input window, operand 3, single buffered']
    #allocation8 [shape = 'u8[262144]{0}', space=vmem, size = 0x40000, scoped, tag = 'input window, operand 5, single buffered']
    #allocation9 [shape = 's32[1]{0}', space=sflag, size = 0x4, scoped, tag = 'scoped memory for tpu_custom_call.1']
    #allocation10 [shape = 'u8[65536]{0}', space=vmem, size = 0x10000, scoped, tag = 'input window, operand 6, single buffered']
    #allocation11 [shape = 'u8[32768]{0}', space=vmem, size = 0x8000, scoped, tag = 'input window, operand 7, single buffered']
    #allocation12 [shape = 's32[1]{0}', space=sflag, size = 0x4, scoped, tag = 'scoped memory for tpu_custom_call.1']
    #allocation13 [shape = 'u8[32768]{0}', space=vmem, size = 0x8000, scoped, tag = 'input window, operand 9, single buffered']
    #allocation14 [shape = 'u8[8192]{0}', space=vmem, size = 0x2000, scoped, tag = 'output window, operand 0, single buffered']
    %16 = vsyncpa [#allocation3], 0
    %17 = vsyncpa [#allocation6], 0
    %18 = vsyncpa [#allocation9], 0
    %19 = vsyncpa [#allocation12], 0
    %20 = vsyncpa [#allocation4], 0
    // Predicated region
    $region2: #{tpu_custom_call.1} parent=1 // pred_check
      _
    $region3: #{tpu_custom_call.1} parent=1 // pred_check_branch
      %22 = sbr.rel (0) target = $region5
    $region4: #{tpu_custom_call.1} parent=1 // pred_region
      %24 = vsyncadd [#allocation3], 0
      %s25 = sshll.u32 %s0, 4
      %s26 = int_to_ptr.hbm [resolvable:$true] %s25
      %s27 = sshll.u32 [#allocation2], 4
      %s28 = int_to_ptr.vmem [resolvable:$true] %s27
      %33 = dma.hbm_to_vmem [thread:$0]  %s26, 128, %s28, [#allocation3], 64, 64, 4
    $region5: #{tpu_custom_call.1} parent=1 // pred_fallthru
      _
    // Predicated region
    $region6: #{tpu_custom_call.1} parent=1 // pred_check
      _
    $region7: #{tpu_custom_call.1} parent=1 // pred_check_branch
      %35 = sbr.rel (0) target = $region9
    $region8: #{tpu_custom_call.1} parent=1 // pred_region
      %37 = vsyncadd [#allocation6], 0
      %s38 = sshll.u32 %s1, 4
      %s39 = int_to_ptr.hbm [resolvable:$true] %s38
      %s40 = sshll.u32 [#allocation5], 4
      %s41 = int_to_ptr.vmem [resolvable:$true] %s40
      %46 = dma.hbm_to_vmem [thread:$0]  %s39, 1024, %s41, [#allocation6], 64, 64, 4
    $region9: #{tpu_custom_call.1} parent=1 // pred_fallthru
      _
    // Predicated region
    $region10: #{tpu_custom_call.1} parent=1 // pred_check
      _
    $region11: #{tpu_custom_call.1} parent=1 // pred_check_branch
      %48 = sbr.rel (0) target = $region13
    $region12: #{tpu_custom_call.1} parent=1 // pred_region
      _
    $region13: #{tpu_custom_call.1} parent=1 // pred_fallthru
      _
    // Predicated region
    $region14: #{tpu_custom_call.1} parent=1 // pred_check
      _
    $region15: #{tpu_custom_call.1} parent=1 // pred_check_branch
      %50 = sbr.rel (0) target = $region17
    $region16: #{tpu_custom_call.1} parent=1 // pred_region
      %52 = vsyncadd [#allocation6], 0
      %s53 = sshll.u32 %s3, 4
      %s54 = int_to_ptr.hbm [resolvable:$true] %s53
      %s55 = sshll.u32 [#allocation7], 4
      %s56 = int_to_ptr.vmem [resolvable:$true] %s55
      %61 = dma.hbm_to_vmem [thread:$0]  %s54, 1024, %s56, [#allocation6], 64, 64, 4
    $region17: #{tpu_custom_call.1} parent=1 // pred_fallthru
      _
    // Predicated region
    $region18: #{tpu_custom_call.1} parent=1 // pred_check
      _
    $region19: #{tpu_custom_call.1} parent=1 // pred_check_branch
      %63 = sbr.rel (0) target = $region21
    $region20: #{tpu_custom_call.1} parent=1 // pred_region
      _
    $region21: #{tpu_custom_call.1} parent=1 // pred_fallthru
      _
    // Predicated region
    $region22: #{tpu_custom_call.1} parent=1 // pred_check
      _
    $region23: #{tpu_custom_call.1} parent=1 // pred_check_branch
      %65 = sbr.rel (0) target = $region25
    $region24: #{tpu_custom_call.1} parent=1 // pred_region
      %67 = vsyncadd [#allocation9], 0
      %s68 = sshll.u32 %s5, 4
      %s69 = int_to_ptr.hbm [resolvable:$true] %s68
      %s70 = sshll.u32 [#allocation8], 4
      %s71 = int_to_ptr.vmem [resolvable:$true] %s70
      %76 = dma.hbm_to_vmem [thread:$0]  %s69, 8192, %s71, [#allocation9], 512, 512, 32
    $region25: #{tpu_custom_call.1} parent=1 // pred_fallthru
      _
    // Predicated region
    $region26: #{tpu_custom_call.1} parent=1 // pred_check
      _
    $region27: #{tpu_custom_call.1} parent=1 // pred_check_branch
      %78 = sbr.rel (0) target = $region29
    $region28: #{tpu_custom_call.1} parent=1 // pred_region
      %80 = vsyncadd [#allocation9], 0
      %s81 = sshll.u32 %s6, 4
      %s82 = int_to_ptr.hbm [resolvable:$true] %s81
      %s83 = sshll.u32 [#allocation10], 4
      %s84 = int_to_ptr.vmem [resolvable:$true] %s83
      %89 = dma.hbm_to_vmem [thread:$0]  %s82, 2048, %s84, [#allocation9], 128, 128, 8
    $region29: #{tpu_custom_call.1} parent=1 // pred_fallthru
      _
    // Predicated region
    $region30: #{tpu_custom_call.1} parent=1 // pred_check
      _
    $region31: #{tpu_custom_call.1} parent=1 // pred_check_branch
      %91 = sbr.rel (0) target = $region33
    $region32: #{tpu_custom_call.1} parent=1 // pred_region
      %93 = vsyncadd [#allocation12], 0
      %s94 = sshll.u32 %s7, 4
      %s95 = int_to_ptr.hbm [resolvable:$true] %s94
      %s96 = sshll.u32 [#allocation11], 4
      %s97 = int_to_ptr.vmem [resolvable:$true] %s96
      %102 = dma.hbm_to_vmem [thread:$0]  %s95, 1024, %s97, [#allocation12], 64, 64, 4
    $region33: #{tpu_custom_call.1} parent=1 // pred_fallthru
      _
    // Predicated region
    $region34: #{tpu_custom_call.1} parent=1 // pred_check
      _
    $region35: #{tpu_custom_call.1} parent=1 // pred_check_branch
      %104 = sbr.rel (0) target = $region37
    $region36: #{tpu_custom_call.1} parent=1 // pred_region
      _
    $region37: #{tpu_custom_call.1} parent=1 // pred_fallthru
      _
    // Predicated region
    $region38: #{tpu_custom_call.1} parent=1 // pred_check
      _
    $region39: #{tpu_custom_call.1} parent=1 // pred_check_branch
      %106 = sbr.rel (0) target = $region41
    $region40: #{tpu_custom_call.1} parent=1 // pred_region
      %108 = vsyncadd [#allocation12], 0
      %s109 = sshll.u32 %s9, 4
      %s110 = int_to_ptr.hbm [resolvable:$true] %s109
      %s111 = sshll.u32 [#allocation13], 4
      %s112 = int_to_ptr.vmem [resolvable:$true] %s111
      %117 = dma.hbm_to_vmem [thread:$0]  %s110, 1024, %s112, [#allocation12], 64, 64, 4
    $region41: #{tpu_custom_call.1} parent=1 // pred_fallthru
      _
    // Predicated region
    $region42: #{tpu_custom_call.1} parent=1 // pred_check
      _
    $region43: #{tpu_custom_call.1} parent=1 // pred_check_branch
      %119 = sbr.rel (0) target = $region45
    $region44: #{tpu_custom_call.1} parent=1 // pred_region
      _
    $region45: #{tpu_custom_call.1} parent=1 // pred_fallthru
      _
    // Predicated region
    $region46: #{tpu_custom_call.1} parent=1 // pred_check
      _
    $region47: #{tpu_custom_call.1} parent=1 // pred_check_branch
      %121 = sbr.rel (0) target = $region49
    $region48: #{tpu_custom_call.1} parent=1 // pred_region
      %123 = dma.done [#allocation3], 128
    $region49: #{tpu_custom_call.1} parent=1 // pred_fallthru
      _
    // Predicated region
    $region50: #{tpu_custom_call.1} parent=1 // pred_check
      _
    $region51: #{tpu_custom_call.1} parent=1 // pred_check_branch
      %125 = sbr.rel (0) target = $region53
    $region52: #{tpu_custom_call.1} parent=1 // pred_region
      %127 = dma.done [#allocation6], 1024
    $region53: #{tpu_custom_call.1} parent=1 // pred_fallthru
      _
    // Predicated region
    $region54: #{tpu_custom_call.1} parent=1 // pred_check
      _
    $region55: #{tpu_custom_call.1} parent=1 // pred_check_branch
      %129 = sbr.rel (0) target = $region57
    $region56: #{tpu_custom_call.1} parent=1 // pred_region
      %131 = dma.done [#allocation6], 1024
    $region57: #{tpu_custom_call.1} parent=1 // pred_fallthru
      _
    // Predicated region
    $region58: #{tpu_custom_call.1} parent=1 // pred_check
      _
    $region59: #{tpu_custom_call.1} parent=1 // pred_check_branch
      %133 = sbr.rel (0) target = $region61
    $region60: #{tpu_custom_call.1} parent=1 // pred_region
      %135 = dma.done [#allocation9], 8192
    $region61: #{tpu_custom_call.1} parent=1 // pred_fallthru
      _
    // Predicated region
    $region62: #{tpu_custom_call.1} parent=1 // pred_check
      _
    $region63: #{tpu_custom_call.1} parent=1 // pred_check_branch
      %137 = sbr.rel (0) target = $region65
    $region64: #{tpu_custom_call.1} parent=1 // pred_region
      %139 = dma.done [#allocation9], 2048
    $region65: #{tpu_custom_call.1} parent=1 // pred_fallthru
      _
    // Predicated region
    $region66: #{tpu_custom_call.1} parent=1 // pred_check
      _
    $region67: #{tpu_custom_call.1} parent=1 // pred_check_branch
      %141 = sbr.rel (0) target = $region69
    $region68: #{tpu_custom_call.1} parent=1 // pred_region
      %143 = dma.done [#allocation12], 1024
    $region69: #{tpu_custom_call.1} parent=1 // pred_fallthru
      _
    // Predicated region
    $region70: #{tpu_custom_call.1} parent=1 // pred_check
      _
    $region71: #{tpu_custom_call.1} parent=1 // pred_check_branch
      %145 = sbr.rel (0) target = $region73
    $region72: #{tpu_custom_call.1} parent=1 // pred_region
      %147 = dma.done [#allocation12], 1024
    $region73: #{tpu_custom_call.1} parent=1 // pred_fallthru
      _
    %v148 = vld [vmem:[#allocation2] sm:$0xf]
    %v149 = vld [vmem:[#allocation2 + $0x4] sm:$0xf]
    %v150 = vld [vmem:[#allocation5] sm:$0xf]
    %v151 = vld [vmem:[#allocation5 + $0x4] sm:$0xf]
    %v152 = vld [vmem:[#allocation5 + $0x8] sm:$0xf]
    %v153 = vld [vmem:[#allocation5 + $0xc] sm:$0xf]
    %v154 = vld [vmem:[#allocation5 + $0x10] sm:$0xf]
    %v155 = vld [vmem:[#allocation5 + $0x14] sm:$0xf]
    %v156 = vld [vmem:[#allocation5 + $0x18] sm:$0xf]
    %v157 = vld [vmem:[#allocation5 + $0x1c] sm:$0xf]
    %v158 = vld [vmem:[#allocation5 + $0x20] sm:$0xf]
    %v159 = vld [vmem:[#allocation5 + $0x24] sm:$0xf]
    %v160 = vld [vmem:[#allocation5 + $0x28] sm:$0xf]
    %v161 = vld [vmem:[#allocation5 + $0x2c] sm:$0xf]
    %v162 = vld [vmem:[#allocation5 + $0x30] sm:$0xf]
    %v163 = vld [vmem:[#allocation5 + $0x34] sm:$0xf]
    %v164 = vld [vmem:[#allocation5 + $0x38] sm:$0xf]
    %v165 = vld [vmem:[#allocation5 + $0x3c] sm:$0xf]
    %v166 = vld [vmem:[%s2] sm:$0x1]
    %v168 = vperm.slane %v166, 0
    %v172 = vunpack.c.l.b16 %v148
    %v173 = vunpack.c.l.b16 %v149
    %v174 = vpack.c.b16 %v173, %v172
    %v192 = vunpack.c.l.b16 %v150
    %v193 = vunpack.c.l.b16 %v151
    %v194 = vunpack.c.l.b16 %v152
    %v195 = vunpack.c.l.b16 %v153
    %v196 = vunpack.c.l.b16 %v154
    %v197 = vunpack.c.l.b16 %v155
    %v198 = vunpack.c.l.b16 %v156
    %v199 = vunpack.c.l.b16 %v157
    %v200 = vunpack.c.l.b16 %v158
    %v201 = vunpack.c.l.b16 %v159
    %v202 = vunpack.c.l.b16 %v160
    %v203 = vunpack.c.l.b16 %v161
    %v204 = vunpack.c.l.b16 %v162
    %v205 = vunpack.c.l.b16 %v163
    %v206 = vunpack.c.l.b16 %v164
    %v207 = vunpack.c.l.b16 %v165
    %v208 = vpack.c.b16 %v193, %v192
    %v209 = vpack.c.b16 %v195, %v194
    %v210 = vpack.c.b16 %v197, %v196
    %v211 = vpack.c.b16 %v199, %v198
    %v212 = vpack.c.b16 %v201, %v200
    %v213 = vpack.c.b16 %v203, %v202
    %v214 = vpack.c.b16 %v205, %v204
    %v215 = vpack.c.b16 %v207, %v206
    %224 = vmatpush.bf16.msra.mxu0 %v215
    %225 = vmatpush.bf16.msra.mxu0 %v214
    %226 = vmatpush.bf16.msra.mxu0 %v213
    %227 = vmatpush.bf16.msra.mxu0 %v212
    %228 = vmatpush.bf16.msra.mxu0 %v211
    %229 = vmatpush.bf16.msra.mxu0 %v210
    %230 = vmatpush.bf16.msra.mxu0 %v209
    %231 = vmatpush.bf16.msra.mxu0 %v208
    %232 = vmatmul.bf16.gmra.mxu0 %v174
    %v233 = vpop.f32.mrf.mxu0
    %v234 = vadd.f32 %v168, %v233
    %v235 = vpop.f32.mrf.mxu0
    %v236 = vadd.f32 %v168, %v235
    %237 = vdwg.mxu0
    %v238 = vmul.f32 %v234, 0.5
    %v239 = vmul.f32 %v236, 0.5
    %v240 = vmul.f32 %v234, 0.044715
    %v241 = vmul.f32 %v236, 0.044715
    %v242 = vmul.f32 %v240, %v234
    %v243 = vmul.f32 %v241, %v236
    %v244 = vmul.f32 %v242, %v234
    %v245 = vmul.f32 %v243, %v236
    %v246 = vadd.f32 %v234, %v244
    %v247 = vadd.f32 %v236, %v245
    %v248 = vmul.f32 %v246, 0.7978846
    %v249 = vmul.f32 %v247, 0.7978846
    %v250 = vtanh.pop %v248
    %v251 = vtanh.pop %v249
    %v252 = vadd.f32 %v250, 1.0
    %v253 = vadd.f32 %v251, 1.0
    %v254 = vmul.f32 %v238, %v252
    %v255 = vmul.f32 %v239, %v253
    %v256 = vpack.c.bf16 %v255, %v254
    %v257 = vld [vmem:[#allocation7] sm:$0xf]
    %v258 = vld [vmem:[#allocation7 + $0x4] sm:$0xf]
    %v259 = vld [vmem:[#allocation7 + $0x8] sm:$0xf]
    %v260 = vld [vmem:[#allocation7 + $0xc] sm:$0xf]
    %v261 = vld [vmem:[#allocation7 + $0x10] sm:$0xf]
    %v262 = vld [vmem:[#allocation7 + $0x14] sm:$0xf]
    %v263 = vld [vmem:[#allocation7 + $0x18] sm:$0xf]
    %v264 = vld [vmem:[#allocation7 + $0x1c] sm:$0xf]
    %v265 = vld [vmem:[#allocation7 + $0x20] sm:$0xf]
    %v266 = vld [vmem:[#allocation7 + $0x24] sm:$0xf]
    %v267 = vld [vmem:[#allocation7 + $0x28] sm:$0xf]
    %v268 = vld [vmem:[#allocation7 + $0x2c] sm:$0xf]
    %v269 = vld [vmem:[#allocation7 + $0x30] sm:$0xf]
    %v270 = vld [vmem:[#allocation7 + $0x34] sm:$0xf]
    %v271 = vld [vmem:[#allocation7 + $0x38] sm:$0xf]
    %v272 = vld [vmem:[#allocation7 + $0x3c] sm:$0xf]
    %v273 = vld [vmem:[%s4] sm:$0x1]
    %v275 = vperm.slane %v273, 0
    %v293 = vunpack.c.l.b16 %v257
    %v294 = vunpack.c.l.b16 %v258
    %v295 = vunpack.c.l.b16 %v259
    %v296 = vunpack.c.l.b16 %v260
    %v297 = vunpack.c.l.b16 %v261
    %v298 = vunpack.c.l.b16 %v262
    %v299 = vunpack.c.l.b16 %v263
    %v300 = vunpack.c.l.b16 %v264
    %v301 = vunpack.c.l.b16 %v265
    %v302 = vunpack.c.l.b16 %v266
    %v303 = vunpack.c.l.b16 %v267
    %v304 = vunpack.c.l.b16 %v268
    %v305 = vunpack.c.l.b16 %v269
    %v306 = vunpack.c.l.b16 %v270
    %v307 = vunpack.c.l.b16 %v271
    %v308 = vunpack.c.l.b16 %v272
    %v309 = vpack.c.b16 %v294, %v293
    %v310 = vpack.c.b16 %v296, %v295
    %v311 = vpack.c.b16 %v298, %v297
    %v312 = vpack.c.b16 %v300, %v299
    %v313 = vpack.c.b16 %v302, %v301
    %v314 = vpack.c.b16 %v304, %v303
    %v315 = vpack.c.b16 %v306, %v305
    %v316 = vpack.c.b16 %v308, %v307
    %325 = vmatpush.bf16.msra.mxu0 %v316
    %326 = vmatpush.bf16.msra.mxu0 %v315
    %327 = vmatpush.bf16.msra.mxu0 %v314
    %328 = vmatpush.bf16.msra.mxu0 %v313
    %329 = vmatpush.bf16.msra.mxu0 %v312
    %330 = vmatpush.bf16.msra.mxu0 %v311
    %331 = vmatpush.bf16.msra.mxu0 %v310
    %332 = vmatpush.bf16.msra.mxu0 %v309
    %333 = vmatmul.bf16.gmra.mxu0 %v256
    %v334 = vpop.f32.mrf.mxu0
    %v335 = vadd.f32 %v275, %v334
    %v336 = vpop.f32.mrf.mxu0
    %v337 = vadd.f32 %v275, %v336
    %338 = vdwg.mxu0
    %339 = vmax.xlane.f32.xlu0 %v335
    %v340 = vpop.xlane.xlu0 %339
    %341 = vmax.xlane.f32.xlu0 %v337
    %v342 = vpop.xlane.xlu0 %341
    %v343 = vsub.f32 %v335, %v340
    %v344 = vsub.f32 %v337, %v342
    %v345 = vmul.f32 %v343, 1.442695
    %v346 = vpow.pop %v345
    %v347 = vmul.f32 %v344, 1.442695
    %v348 = vpow.pop %v347
    %349 = vadd.xlane.f32.xlu0 %v346
    %v350 = vpop.xlane.xlu0 %349
    %351 = vadd.xlane.f32.xlu0 %v348
    %v352 = vpop.xlane.xlu0 %351
    %v353 = vrcp.pop %v350
    %v354 = vrcp.pop %v352
    %v355 = vmul.f32 %v346, %v353
    %v356 = vmul.f32 %v348, %v354
    %v357 = vld [vmem:[#allocation10] sm:$0xff]
    %v358 = vld [vmem:[#allocation10 + $0x8] sm:$0xff]
    %v359 = vld [vmem:[#allocation10 + $0x10] sm:$0xff]
    %v360 = vld [vmem:[#allocation10 + $0x18] sm:$0xff]
    %v361 = vld [vmem:[#allocation10 + $0x20] sm:$0xff]
    %v362 = vld [vmem:[#allocation10 + $0x28] sm:$0xff]
    %v363 = vld [vmem:[#allocation10 + $0x30] sm:$0xff]
    %v364 = vld [vmem:[#allocation10 + $0x38] sm:$0xff]
    %v365 = vld [vmem:[#allocation10 + $0x40] sm:$0xff]
    %v366 = vld [vmem:[#allocation10 + $0x48] sm:$0xff]
    %v367 = vld [vmem:[#allocation10 + $0x50] sm:$0xff]
    %v368 = vld [vmem:[#allocation10 + $0x58] sm:$0xff]
    %v369 = vld [vmem:[#allocation10 + $0x60] sm:$0xff]
    %v370 = vld [vmem:[#allocation10 + $0x68] sm:$0xff]
    %v371 = vld [vmem:[#allocation10 + $0x70] sm:$0xff]
    %v372 = vld [vmem:[#allocation10 + $0x78] sm:$0xff]
    %v373 = vld [vmem:[#allocation8] sm:$0xf]
    %v374 = vld [vmem:[#allocation8 + $0x20] sm:$0xf]
    %v375 = vld [vmem:[#allocation8 + $0x40] sm:$0xf]
    %v376 = vld [vmem:[#allocation8 + $0x60] sm:$0xf]
    %v377 = vld [vmem:[#allocation8 + $0x80] sm:$0xf]
    %v378 = vld [vmem:[#allocation8 + $0xa0] sm:$0xf]
    %v379 = vld [vmem:[#allocation8 + $0xc0] sm:$0xf]
    %v380 = vld [vmem:[#allocation8 + $0xe0] sm:$0xf]
    %v381 = vld [vmem:[#allocation8 + $0x100] sm:$0xf]
    %v382 = vld [vmem:[#allocation8 + $0x120] sm:$0xf]
    %v383 = vld [vmem:[#allocation8 + $0x140] sm:$0xf]
    %v384 = vld [vmem:[#allocation8 + $0x160] sm:$0xf]
    %v385 = vld [vmem:[#allocation8 + $0x180] sm:$0xf]
    %v386 = vld [vmem:[#allocation8 + $0x1a0] sm:$0xf]
    %v387 = vld [vmem:[#allocation8 + $0x1c0] sm:$0xf]
    %v388 = vld [vmem:[#allocation8 + $0x1e0] sm:$0xf]
    %v405 = vunpack.c.l.b16 %v373
    %v406 = vunpack.c.l.b16 %v374
    %v407 = vunpack.c.l.b16 %v375
    %v408 = vunpack.c.l.b16 %v376
    %v409 = vunpack.c.l.b16 %v377
    %v410 = vunpack.c.l.b16 %v378
    %v411 = vunpack.c.l.b16 %v379
    %v412 = vunpack.c.l.b16 %v380
    %v413 = vunpack.c.l.b16 %v381
    %v414 = vunpack.c.l.b16 %v382
    %v415 = vunpack.c.l.b16 %v383
    %v416 = vunpack.c.l.b16 %v384
    %v417 = vunpack.c.l.b16 %v385
    %v418 = vunpack.c.l.b16 %v386
    %v419 = vunpack.c.l.b16 %v387
    %v420 = vunpack.c.l.b16 %v388
    %v421 = vpack.c.b16 %v406, %v405
    %v422 = vpack.c.b16 %v408, %v407
    %v423 = vpack.c.b16 %v410, %v409
    %v424 = vpack.c.b16 %v412, %v411
    %v425 = vpack.c.b16 %v414, %v413
    %v426 = vpack.c.b16 %v416, %v415
    %v427 = vpack.c.b16 %v418, %v417
    %v428 = vpack.c.b16 %v420, %v419
    %437 = vmatpush.bf16.msra.mxu0 %v428
    %438 = vmatpush.bf16.msra.mxu0 %v427
    %439 = vmatpush.bf16.msra.mxu0 %v426
    %440 = vmatpush.bf16.msra.mxu0 %v425
    %441 = vmatpush.bf16.msra.mxu0 %v424
    %442 = vmatpush.bf16.msra.mxu0 %v423
    %443 = vmatpush.bf16.msra.mxu0 %v422
    %444 = vmatpush.bf16.msra.mxu0 %v421
    %445 = vmatmul.bf16.gmra.mxu0 %v174
    %v446 = vpop.f32.mrf.mxu0
    %v447 = vadd.f32 0.0, %v446
    %v448 = vpop.f32.mrf.mxu0
    %v449 = vadd.f32 0.0, %v448
    %450 = vdwg.mxu0
    %452 = vset.pattern.permute.xlu0 0
    %453 = vperm.xlu0 %452, %v355
    %v454 = vpop.permute.xlu0 %453
    %457 = vset.pattern.permute.xlu0 0
    %458 = vperm.xlu0 %457, %v356
    %v459 = vpop.permute.xlu0 %458
    %v461 = vmul.f32 %v454, %v447
    %v462 = vmul.f32 %v459, %v449
    %463 = vmatpush.msra.mxu0 %v372
    %464 = vmatpush.msra.mxu0 %v371
    %465 = vmatpush.msra.mxu0 %v370
    %466 = vmatpush.msra.mxu0 %v369
    %467 = vmatpush.msra.mxu0 %v368
    %468 = vmatpush.msra.mxu0 %v367
    %469 = vmatpush.msra.mxu0 %v366
    %470 = vmatpush.msra.mxu0 %v365
    %471 = vmatpush.msra.mxu0 %v364
    %472 = vmatpush.msra.mxu0 %v363
    %473 = vmatpush.msra.mxu0 %v362
    %474 = vmatpush.msra.mxu0 %v361
    %475 = vmatpush.msra.mxu0 %v360
    %476 = vmatpush.msra.mxu0 %v359
    %477 = vmatpush.msra.mxu0 %v358
    %478 = vmatpush.msra.mxu0 %v357
    %479 = vmatmul.f32.gmra.mxu0 %v355
    %v480 = vpop.f32.mrf.mxu0
    %v481 = vadd.f32 %v461, %v480
    %482 = vmatmul.f32.gmra.mxu0 %v356
    %v483 = vpop.f32.mrf.mxu0
    %v484 = vadd.f32 %v462, %v483
    %485 = vdwg.mxu0
    %v486 = vld [vmem:[#allocation8 + $0x4] sm:$0xf]
    %v487 = vld [vmem:[#allocation8 + $0x24] sm:$0xf]
    %v488 = vld [vmem:[#allocation8 + $0x44] sm:$0xf]
    %v489 = vld [vmem:[#allocation8 + $0x64] sm:$0xf]
    %v490 = vld [vmem:[#allocation8 + $0x84] sm:$0xf]
    %v491 = vld [vmem:[#allocation8 + $0xa4] sm:$0xf]
    %v492 = vld [vmem:[#allocation8 + $0xc4] sm:$0xf]
    %v493 = vld [vmem:[#allocation8 + $0xe4] sm:$0xf]
    %v494 = vld [vmem:[#allocation8 + $0x104] sm:$0xf]
    %v495 = vld [vmem:[#allocation8 + $0x124] sm:$0xf]
    %v496 = vld [vmem:[#allocation8 + $0x144] sm:$0xf]
    %v497 = vld [vmem:[#allocation8 + $0x164] sm:$0xf]
    %v498 = vld [vmem:[#allocation8 + $0x184] sm:$0xf]
    %v499 = vld [vmem:[#allocation8 + $0x1a4] sm:$0xf]
    %v500 = vld [vmem:[#allocation8 + $0x1c4] sm:$0xf]
    %v501 = vld [vmem:[#allocation8 + $0x1e4] sm:$0xf]
    %v518 = vunpack.c.l.b16 %v486
    %v519 = vunpack.c.l.b16 %v487
    %v520 = vunpack.c.l.b16 %v488
    %v521 = vunpack.c.l.b16 %v489
    %v522 = vunpack.c.l.b16 %v490
    %v523 = vunpack.c.l.b16 %v491
    %v524 = vunpack.c.l.b16 %v492
    %v525 = vunpack.c.l.b16 %v493
    %v526 = vunpack.c.l.b16 %v494
    %v527 = vunpack.c.l.b16 %v495
    %v528 = vunpack.c.l.b16 %v496
    %v529 = vunpack.c.l.b16 %v497
    %v530 = vunpack.c.l.b16 %v498
    %v531 = vunpack.c.l.b16 %v499
    %v532 = vunpack.c.l.b16 %v500
    %v533 = vunpack.c.l.b16 %v501
    %v534 = vpack.c.b16 %v519, %v518
    %v535 = vpack.c.b16 %v521, %v520
    %v536 = vpack.c.b16 %v523, %v522
    %v537 = vpack.c.b16 %v525, %v524
    %v538 = vpack.c.b16 %v527, %v526
    %v539 = vpack.c.b16 %v529, %v528
    %v540 = vpack.c.b16 %v531, %v530
    %v541 = vpack.c.b16 %v533, %v532
    %550 = vmatpush.bf16.msra.mxu0 %v541
    %551 = vmatpush.bf16.msra.mxu0 %v540
    %552 = vmatpush.bf16.msra.mxu0 %v539
    %553 = vmatpush.bf16.msra.mxu0 %v538
    %554 = vmatpush.bf16.msra.mxu0 %v537
    %555 = vmatpush.bf16.msra.mxu0 %v536
    %556 = vmatpush.bf16.msra.mxu0 %v535
    %557 = vmatpush.bf16.msra.mxu0 %v534
    %558 = vmatmul.bf16.gmra.mxu0 %v174
    %v559 = vpop.f32.mrf.mxu0
    %v560 = vadd.f32 0.0, %v559
    %v561 = vpop.f32.mrf.mxu0
    %v562 = vadd.f32 0.0, %v561
    %563 = vdwg.mxu0
    %564 = vset.pattern.permute.xlu0 1
    %565 = vperm.xlu0 %564, %v355
    %v566 = vpop.permute.xlu0 %565
    %568 = vset.pattern.permute.xlu0 1
    %569 = vperm.xlu0 %568, %v356
    %v570 = vpop.permute.xlu0 %569
    %v572 = vmul.f32 %v566, %v560
    %v573 = vmul.f32 %v570, %v562
    %v574 = vadd.f32 %v481, %v572
    %v575 = vadd.f32 %v484, %v573
    %v576 = vld [vmem:[#allocation8 + $0x8] sm:$0xf]
    %v577 = vld [vmem:[#allocation8 + $0x28] sm:$0xf]
    %v578 = vld [vmem:[#allocation8 + $0x48] sm:$0xf]
    %v579 = vld [vmem:[#allocation8 + $0x68] sm:$0xf]
    %v580 = vld [vmem:[#allocation8 + $0x88] sm:$0xf]
    %v581 = vld [vmem:[#allocation8 + $0xa8] sm:$0xf]
    %v582 = vld [vmem:[#allocation8 + $0xc8] sm:$0xf]
    %v583 = vld [vmem:[#allocation8 + $0xe8] sm:$0xf]
    %v584 = vld [vmem:[#allocation8 + $0x108] sm:$0xf]
    %v585 = vld [vmem:[#allocation8 + $0x128] sm:$0xf]
    %v586 = vld [vmem:[#allocation8 + $0x148] sm:$0xf]
    %v587 = vld [vmem:[#allocation8 + $0x168] sm:$0xf]
    %v588 = vld [vmem:[#allocation8 + $0x188] sm:$0xf]
    %v589 = vld [vmem:[#allocation8 + $0x1a8] sm:$0xf]
    %v590 = vld [vmem:[#allocation8 + $0x1c8] sm:$0xf]
    %v591 = vld [vmem:[#allocation8 + $0x1e8] sm:$0xf]
    %v608 = vunpack.c.l.b16 %v576
    %v609 = vunpack.c.l.b16 %v577
    %v610 = vunpack.c.l.b16 %v578
    %v611 = vunpack.c.l.b16 %v579
    %v612 = vunpack.c.l.b16 %v580
    %v613 = vunpack.c.l.b16 %v581
    %v614 = vunpack.c.l.b16 %v582
    %v615 = vunpack.c.l.b16 %v583
    %v616 = vunpack.c.l.b16 %v584
    %v617 = vunpack.c.l.b16 %v585
    %v618 = vunpack.c.l.b16 %v586
    %v619 = vunpack.c.l.b16 %v587
    %v620 = vunpack.c.l.b16 %v588
    %v621 = vunpack.c.l.b16 %v589
    %v622 = vunpack.c.l.b16 %v590
    %v623 = vunpack.c.l.b16 %v591
    %v624 = vpack.c.b16 %v609, %v608
    %v625 = vpack.c.b16 %v611, %v610
    %v626 = vpack.c.b16 %v613, %v612
    %v627 = vpack.c.b16 %v615, %v614
    %v628 = vpack.c.b16 %v617, %v616
    %v629 = vpack.c.b16 %v619, %v618
    %v630 = vpack.c.b16 %v621, %v620
    %v631 = vpack.c.b16 %v623, %v622
    %640 = vmatpush.bf16.msra.mxu0 %v631
    %641 = vmatpush.bf16.msra.mxu0 %v630
    %642 = vmatpush.bf16.msra.mxu0 %v629
    %643 = vmatpush.bf16.msra.mxu0 %v628
    %644 = vmatpush.bf16.msra.mxu0 %v627
    %645 = vmatpush.bf16.msra.mxu0 %v626
    %646 = vmatpush.bf16.msra.mxu0 %v625
    %647 = vmatpush.bf16.msra.mxu0 %v624
    %648 = vmatmul.bf16.gmra.mxu0 %v174
    %v649 = vpop.f32.mrf.mxu0
    %v650 = vadd.f32 0.0, %v649
    %v651 = vpop.f32.mrf.mxu0
    %v652 = vadd.f32 0.0, %v651
    %653 = vdwg.mxu0
    %654 = vset.pattern.permute.xlu0 2
    %655 = vperm.xlu0 %654, %v355
    %v656 = vpop.permute.xlu0 %655
    %658 = vset.pattern.permute.xlu0 2
    %659 = vperm.xlu0 %658, %v356
    %v660 = vpop.permute.xlu0 %659
    %v662 = vmul.f32 %v656, %v650
    %v663 = vmul.f32 %v660, %v652
    %v664 = vadd.f32 %v574, %v662
    %v665 = vadd.f32 %v575, %v663
    %v666 = vld [vmem:[#allocation8 + $0xc] sm:$0xf]
    %v667 = vld [vmem:[#allocation8 + $0x2c] sm:$0xf]
    %v668 = vld [vmem:[#allocation8 + $0x4c] sm:$0xf]
    %v669 = vld [vmem:[#allocation8 + $0x6c] sm:$0xf]
    %v670 = vld [vmem:[#allocation8 + $0x8c] sm:$0xf]
    %v671 = vld [vmem:[#allocation8 + $0xac] sm:$0xf]
    %v672 = vld [vmem:[#allocation8 + $0xcc] sm:$0xf]
    %v673 = vld [vmem:[#allocation8 + $0xec] sm:$0xf]
    %v674 = vld [vmem:[#allocation8 + $0x10c] sm:$0xf]
    %v675 = vld [vmem:[#allocation8 + $0x12c] sm:$0xf]
    %v676 = vld [vmem:[#allocation8 + $0x14c] sm:$0xf]
    %v677 = vld [vmem:[#allocation8 + $0x16c] sm:$0xf]
    %v678 = vld [vmem:[#allocation8 + $0x18c] sm:$0xf]
    %v679 = vld [vmem:[#allocation8 + $0x1ac] sm:$0xf]
    %v680 = vld [vmem:[#allocation8 + $0x1cc] sm:$0xf]
    %v681 = vld [vmem:[#allocation8 + $0x1ec] sm:$0xf]
    %v698 = vunpack.c.l.b16 %v666
    %v699 = vunpack.c.l.b16 %v667
    %v700 = vunpack.c.l.b16 %v668
    %v701 = vunpack.c.l.b16 %v669
    %v702 = vunpack.c.l.b16 %v670
    %v703 = vunpack.c.l.b16 %v671
    %v704 = vunpack.c.l.b16 %v672
    %v705 = vunpack.c.l.b16 %v673
    %v706 = vunpack.c.l.b16 %v674
    %v707 = vunpack.c.l.b16 %v675
    %v708 = vunpack.c.l.b16 %v676
    %v709 = vunpack.c.l.b16 %v677
    %v710 = vunpack.c.l.b16 %v678
    %v711 = vunpack.c.l.b16 %v679
    %v712 = vunpack.c.l.b16 %v680
    %v713 = vunpack.c.l.b16 %v681
    %v714 = vpack.c.b16 %v699, %v698
    %v715 = vpack.c.b16 %v701, %v700
    %v716 = vpack.c.b16 %v703, %v702
    %v717 = vpack.c.b16 %v705, %v704
    %v718 = vpack.c.b16 %v707, %v706
    %v719 = vpack.c.b16 %v709, %v708
    %v720 = vpack.c.b16 %v711, %v710
    %v721 = vpack.c.b16 %v713, %v712
    %730 = vmatpush.bf16.msra.mxu0 %v721
    %731 = vmatpush.bf16.msra.mxu0 %v720
    %732 = vmatpush.bf16.msra.mxu0 %v719
    %733 = vmatpush.bf16.msra.mxu0 %v718
    %734 = vmatpush.bf16.msra.mxu0 %v717
    %735 = vmatpush.bf16.msra.mxu0 %v716
    %736 = vmatpush.bf16.msra.mxu0 %v715
    %737 = vmatpush.bf16.msra.mxu0 %v714
    %738 = vmatmul.bf16.gmra.mxu0 %v174
    %v739 = vpop.f32.mrf.mxu0
    %v740 = vadd.f32 0.0, %v739
    %v741 = vpop.f32.mrf.mxu0
    %v742 = vadd.f32 0.0, %v741
    %743 = vdwg.mxu0
    %744 = vset.pattern.permute.xlu0 3
    %745 = vperm.xlu0 %744, %v355
    %v746 = vpop.permute.xlu0 %745
    %748 = vset.pattern.permute.xlu0 3
    %749 = vperm.xlu0 %748, %v356
    %v750 = vpop.permute.xlu0 %749
    %v752 = vmul.f32 %v746, %v740
    %v753 = vmul.f32 %v750, %v742
    %v754 = vadd.f32 %v664, %v752
    %v755 = vadd.f32 %v665, %v753
    %v756 = vld [vmem:[#allocation8 + $0x10] sm:$0xf]
    %v757 = vld [vmem:[#allocation8 + $0x30] sm:$0xf]
    %v758 = vld [vmem:[#allocation8 + $0x50] sm:$0xf]
    %v759 = vld [vmem:[#allocation8 + $0x70] sm:$0xf]
    %v760 = vld [vmem:[#allocation8 + $0x90] sm:$0xf]
    %v761 = vld [vmem:[#allocation8 + $0xb0] sm:$0xf]
    %v762 = vld [vmem:[#allocation8 + $0xd0] sm:$0xf]
    %v763 = vld [vmem:[#allocation8 + $0xf0] sm:$0xf]
    %v764 = vld [vmem:[#allocation8 + $0x110] sm:$0xf]
    %v765 = vld [vmem:[#allocation8 + $0x130] sm:$0xf]
    %v766 = vld [vmem:[#allocation8 + $0x150] sm:$0xf]
    %v767 = vld [vmem:[#allocation8 + $0x170] sm:$0xf]
    %v768 = vld [vmem:[#allocation8 + $0x190] sm:$0xf]
    %v769 = vld [vmem:[#allocation8 + $0x1b0] sm:$0xf]
    %v770 = vld [vmem:[#allocation8 + $0x1d0] sm:$0xf]
    %v771 = vld [vmem:[#allocation8 + $0x1f0] sm:$0xf]
    %v788 = vunpack.c.l.b16 %v756
    %v789 = vunpack.c.l.b16 %v757
    %v790 = vunpack.c.l.b16 %v758
    %v791 = vunpack.c.l.b16 %v759
    %v792 = vunpack.c.l.b16 %v760
    %v793 = vunpack.c.l.b16 %v761
    %v794 = vunpack.c.l.b16 %v762
    %v795 = vunpack.c.l.b16 %v763
    %v796 = vunpack.c.l.b16 %v764
    %v797 = vunpack.c.l.b16 %v765
    %v798 = vunpack.c.l.b16 %v766
    %v799 = vunpack.c.l.b16 %v767
    %v800 = vunpack.c.l.b16 %v768
    %v801 = vunpack.c.l.b16 %v769
    %v802 = vunpack.c.l.b16 %v770
    %v803 = vunpack.c.l.b16 %v771
    %v804 = vpack.c.b16 %v789, %v788
    %v805 = vpack.c.b16 %v791, %v790
    %v806 = vpack.c.b16 %v793, %v792
    %v807 = vpack.c.b16 %v795, %v794
    %v808 = vpack.c.b16 %v797, %v796
    %v809 = vpack.c.b16 %v799, %v798
    %v810 = vpack.c.b16 %v801, %v800
    %v811 = vpack.c.b16 %v803, %v802
    %820 = vmatpush.bf16.msra.mxu0 %v811
    %821 = vmatpush.bf16.msra.mxu0 %v810
    %822 = vmatpush.bf16.msra.mxu0 %v809
    %823 = vmatpush.bf16.msra.mxu0 %v808
    %824 = vmatpush.bf16.msra.mxu0 %v807
    %825 = vmatpush.bf16.msra.mxu0 %v806
    %826 = vmatpush.bf16.msra.mxu0 %v805
    %827 = vmatpush.bf16.msra.mxu0 %v804
    %828 = vmatmul.bf16.gmra.mxu0 %v174
    %v829 = vpop.f32.mrf.mxu0
    %v830 = vadd.f32 0.0, %v829
    %v831 = vpop.f32.mrf.mxu0
    %v832 = vadd.f32 0.0, %v831
    %833 = vdwg.mxu0
    %834 = vset.pattern.permute.xlu0 4
    %835 = vperm.xlu0 %834, %v355
    %v836 = vpop.permute.xlu0 %835
    %838 = vset.pattern.permute.xlu0 4
    %839 = vperm.xlu0 %838, %v356
    %v840 = vpop.permute.xlu0 %839
    %v842 = vmul.f32 %v836, %v830
    %v843 = vmul.f32 %v840, %v832
    %v844 = vadd.f32 %v754, %v842
    %v845 = vadd.f32 %v755, %v843
    %v846 = vld [vmem:[#allocation8 + $0x14] sm:$0xf]
    %v847 = vld [vmem:[#allocation8 + $0x34] sm:$0xf]
    %v848 = vld [vmem:[#allocation8 + $0x54] sm:$0xf]
    %v849 = vld [vmem:[#allocation8 + $0x74] sm:$0xf]
    %v850 = vld [vmem:[#allocation8 + $0x94] sm:$0xf]
    %v851 = vld [vmem:[#allocation8 + $0xb4] sm:$0xf]
    %v852 = vld [vmem:[#allocation8 + $0xd4] sm:$0xf]
    %v853 = vld [vmem:[#allocation8 + $0xf4] sm:$0xf]
    %v854 = vld [vmem:[#allocation8 + $0x114] sm:$0xf]
    %v855 = vld [vmem:[#allocation8 + $0x134] sm:$0xf]
    %v856 = vld [vmem:[#allocation8 + $0x154] sm:$0xf]
    %v857 = vld [vmem:[#allocation8 + $0x174] sm:$0xf]
    %v858 = vld [vmem:[#allocation8 + $0x194] sm:$0xf]
    %v859 = vld [vmem:[#allocation8 + $0x1b4] sm:$0xf]
    %v860 = vld [vmem:[#allocation8 + $0x1d4] sm:$0xf]
    %v861 = vld [vmem:[#allocation8 + $0x1f4] sm:$0xf]
    %v878 = vunpack.c.l.b16 %v846
    %v879 = vunpack.c.l.b16 %v847
    %v880 = vunpack.c.l.b16 %v848
    %v881 = vunpack.c.l.b16 %v849
    %v882 = vunpack.c.l.b16 %v850
    %v883 = vunpack.c.l.b16 %v851
    %v884 = vunpack.c.l.b16 %v852
    %v885 = vunpack.c.l.b16 %v853
    %v886 = vunpack.c.l.b16 %v854
    %v887 = vunpack.c.l.b16 %v855
    %v888 = vunpack.c.l.b16 %v856
    %v889 = vunpack.c.l.b16 %v857
    %v890 = vunpack.c.l.b16 %v858
    %v891 = vunpack.c.l.b16 %v859
    %v892 = vunpack.c.l.b16 %v860
    %v893 = vunpack.c.l.b16 %v861
    %v894 = vpack.c.b16 %v879, %v878
    %v895 = vpack.c.b16 %v881, %v880
    %v896 = vpack.c.b16 %v883, %v882
    %v897 = vpack.c.b16 %v885, %v884
    %v898 = vpack.c.b16 %v887, %v886
    %v899 = vpack.c.b16 %v889, %v888
    %v900 = vpack.c.b16 %v891, %v890
    %v901 = vpack.c.b16 %v893, %v892
    %910 = vmatpush.bf16.msra.mxu0 %v901
    %911 = vmatpush.bf16.msra.mxu0 %v900
    %912 = vmatpush.bf16.msra.mxu0 %v899
    %913 = vmatpush.bf16.msra.mxu0 %v898
    %914 = vmatpush.bf16.msra.mxu0 %v897
    %915 = vmatpush.bf16.msra.mxu0 %v896
    %916 = vmatpush.bf16.msra.mxu0 %v895
    %917 = vmatpush.bf16.msra.mxu0 %v894
    %918 = vmatmul.bf16.gmra.mxu0 %v174
    %v919 = vpop.f32.mrf.mxu0
    %v920 = vadd.f32 0.0, %v919
    %v921 = vpop.f32.mrf.mxu0
    %v922 = vadd.f32 0.0, %v921
    %923 = vdwg.mxu0
    %924 = vset.pattern.permute.xlu0 5
    %925 = vperm.xlu0 %924, %v355
    %v926 = vpop.permute.xlu0 %925
    %928 = vset.pattern.permute.xlu0 5
    %929 = vperm.xlu0 %928, %v356
    %v930 = vpop.permute.xlu0 %929
    %v932 = vmul.f32 %v926, %v920
    %v933 = vmul.f32 %v930, %v922
    %v934 = vadd.f32 %v844, %v932
    %v935 = vadd.f32 %v845, %v933
    %v936 = vld [vmem:[#allocation8 + $0x18] sm:$0xf]
    %v937 = vld [vmem:[#allocation8 + $0x38] sm:$0xf]
    %v938 = vld [vmem:[#allocation8 + $0x58] sm:$0xf]
    %v939 = vld [vmem:[#allocation8 + $0x78] sm:$0xf]
    %v940 = vld [vmem:[#allocation8 + $0x98] sm:$0xf]
    %v941 = vld [vmem:[#allocation8 + $0xb8] sm:$0xf]
    %v942 = vld [vmem:[#allocation8 + $0xd8] sm:$0xf]
    %v943 = vld [vmem:[#allocation8 + $0xf8] sm:$0xf]
    %v944 = vld [vmem:[#allocation8 + $0x118] sm:$0xf]
    %v945 = vld [vmem:[#allocation8 + $0x138] sm:$0xf]
    %v946 = vld [vmem:[#allocation8 + $0x158] sm:$0xf]
    %v947 = vld [vmem:[#allocation8 + $0x178] sm:$0xf]
    %v948 = vld [vmem:[#allocation8 + $0x198] sm:$0xf]
    %v949 = vld [vmem:[#allocation8 + $0x1b8] sm:$0xf]
    %v950 = vld [vmem:[#allocation8 + $0x1d8] sm:$0xf]
    %v951 = vld [vmem:[#allocation8 + $0x1f8] sm:$0xf]
    %v968 = vunpack.c.l.b16 %v936
    %v969 = vunpack.c.l.b16 %v937
    %v970 = vunpack.c.l.b16 %v938
    %v971 = vunpack.c.l.b16 %v939
    %v972 = vunpack.c.l.b16 %v940
    %v973 = vunpack.c.l.b16 %v941
    %v974 = vunpack.c.l.b16 %v942
    %v975 = vunpack.c.l.b16 %v943
    %v976 = vunpack.c.l.b16 %v944
    %v977 = vunpack.c.l.b16 %v945
    %v978 = vunpack.c.l.b16 %v946
    %v979 = vunpack.c.l.b16 %v947
    %v980 = vunpack.c.l.b16 %v948
    %v981 = vunpack.c.l.b16 %v949
    %v982 = vunpack.c.l.b16 %v950
    %v983 = vunpack.c.l.b16 %v951
    %v984 = vpack.c.b16 %v969, %v968
    %v985 = vpack.c.b16 %v971, %v970
    %v986 = vpack.c.b16 %v973, %v972
    %v987 = vpack.c.b16 %v975, %v974
    %v988 = vpack.c.b16 %v977, %v976
    %v989 = vpack.c.b16 %v979, %v978
    %v990 = vpack.c.b16 %v981, %v980
    %v991 = vpack.c.b16 %v983, %v982
    %1000 = vmatpush.bf16.msra.mxu0 %v991
    %1001 = vmatpush.bf16.msra.mxu0 %v990
    %1002 = vmatpush.bf16.msra.mxu0 %v989
    %1003 = vmatpush.bf16.msra.mxu0 %v988
    %1004 = vmatpush.bf16.msra.mxu0 %v987
    %1005 = vmatpush.bf16.msra.mxu0 %v986
    %1006 = vmatpush.bf16.msra.mxu0 %v985
    %1007 = vmatpush.bf16.msra.mxu0 %v984
    %1008 = vmatmul.bf16.gmra.mxu0 %v174
    %v1009 = vpop.f32.mrf.mxu0
    %v1010 = vadd.f32 0.0, %v1009
    %v1011 = vpop.f32.mrf.mxu0
    %v1012 = vadd.f32 0.0, %v1011
    %1013 = vdwg.mxu0
    %1014 = vset.pattern.permute.xlu0 6
    %1015 = vperm.xlu0 %1014, %v355
    %v1016 = vpop.permute.xlu0 %1015
    %1018 = vset.pattern.permute.xlu0 6
    %1019 = vperm.xlu0 %1018, %v356
    %v1020 = vpop.permute.xlu0 %1019
    %v1022 = vmul.f32 %v1016, %v1010
    %v1023 = vmul.f32 %v1020, %v1012
    %v1024 = vadd.f32 %v934, %v1022
    %v1025 = vadd.f32 %v935, %v1023
    %v1026 = vld [vmem:[#allocation8 + $0x1c] sm:$0xf]
    %v1027 = vld [vmem:[#allocation8 + $0x3c] sm:$0xf]
    %v1028 = vld [vmem:[#allocation8 + $0x5c] sm:$0xf]
    %v1029 = vld [vmem:[#allocation8 + $0x7c] sm:$0xf]
    %v1030 = vld [vmem:[#allocation8 + $0x9c] sm:$0xf]
    %v1031 = vld [vmem:[#allocation8 + $0xbc] sm:$0xf]
    %v1032 = vld [vmem:[#allocation8 + $0xdc] sm:$0xf]
    %v1033 = vld [vmem:[#allocation8 + $0xfc] sm:$0xf]
    %v1034 = vld [vmem:[#allocation8 + $0x11c] sm:$0xf]
    %v1035 = vld [vmem:[#allocation8 + $0x13c] sm:$0xf]
    %v1036 = vld [vmem:[#allocation8 + $0x15c] sm:$0xf]
    %v1037 = vld [vmem:[#allocation8 + $0x17c] sm:$0xf]
    %v1038 = vld [vmem:[#allocation8 + $0x19c] sm:$0xf]
    %v1039 = vld [vmem:[#allocation8 + $0x1bc] sm:$0xf]
    %v1040 = vld [vmem:[#allocation8 + $0x1dc] sm:$0xf]
    %v1041 = vld [vmem:[#allocation8 + $0x1fc] sm:$0xf]
    %v1058 = vunpack.c.l.b16 %v1026
    %v1059 = vunpack.c.l.b16 %v1027
    %v1060 = vunpack.c.l.b16 %v1028
    %v1061 = vunpack.c.l.b16 %v1029
    %v1062 = vunpack.c.l.b16 %v1030
    %v1063 = vunpack.c.l.b16 %v1031
    %v1064 = vunpack.c.l.b16 %v1032
    %v1065 = vunpack.c.l.b16 %v1033
    %v1066 = vunpack.c.l.b16 %v1034
    %v1067 = vunpack.c.l.b16 %v1035
    %v1068 = vunpack.c.l.b16 %v1036
    %v1069 = vunpack.c.l.b16 %v1037
    %v1070 = vunpack.c.l.b16 %v1038
    %v1071 = vunpack.c.l.b16 %v1039
    %v1072 = vunpack.c.l.b16 %v1040
    %v1073 = vunpack.c.l.b16 %v1041
    %v1074 = vpack.c.b16 %v1059, %v1058
    %v1075 = vpack.c.b16 %v1061, %v1060
    %v1076 = vpack.c.b16 %v1063, %v1062
    %v1077 = vpack.c.b16 %v1065, %v1064
    %v1078 = vpack.c.b16 %v1067, %v1066
    %v1079 = vpack.c.b16 %v1069, %v1068
    %v1080 = vpack.c.b16 %v1071, %v1070
    %v1081 = vpack.c.b16 %v1073, %v1072
    %1090 = vmatpush.bf16.msra.mxu0 %v1081
    %1091 = vmatpush.bf16.msra.mxu0 %v1080
    %1092 = vmatpush.bf16.msra.mxu0 %v1079
    %1093 = vmatpush.bf16.msra.mxu0 %v1078
    %1094 = vmatpush.bf16.msra.mxu0 %v1077
    %1095 = vmatpush.bf16.msra.mxu0 %v1076
    %1096 = vmatpush.bf16.msra.mxu0 %v1075
    %1097 = vmatpush.bf16.msra.mxu0 %v1074
    %1098 = vmatmul.bf16.gmra.mxu0 %v174
    %v1099 = vpop.f32.mrf.mxu0
    %v1100 = vadd.f32 0.0, %v1099
    %v1101 = vpop.f32.mrf.mxu0
    %v1102 = vadd.f32 0.0, %v1101
    %1103 = vdwg.mxu0
    %1104 = vset.pattern.permute.xlu0 7
    %1105 = vperm.xlu0 %1104, %v355
    %v1106 = vpop.permute.xlu0 %1105
    %1108 = vset.pattern.permute.xlu0 7
    %1109 = vperm.xlu0 %1108, %v356
    %v1110 = vpop.permute.xlu0 %1109
    %v1112 = vmul.f32 %v1106, %v1100
    %v1113 = vmul.f32 %v1110, %v1102
    %v1114 = vadd.f32 %v1024, %v1112
    %v1115 = vadd.f32 %v1025, %v1113
    %v1116 = vpack.c.bf16 %v1115, %v1114
    %v1117 = vld [vmem:[#allocation11] sm:$0xf]
    %v1118 = vld [vmem:[#allocation11 + $0x4] sm:$0xf]
    %v1119 = vld [vmem:[#allocation11 + $0x8] sm:$0xf]
    %v1120 = vld [vmem:[#allocation11 + $0xc] sm:$0xf]
    %v1121 = vld [vmem:[#allocation11 + $0x10] sm:$0xf]
    %v1122 = vld [vmem:[#allocation11 + $0x14] sm:$0xf]
    %v1123 = vld [vmem:[#allocation11 + $0x18] sm:$0xf]
    %v1124 = vld [vmem:[#allocation11 + $0x1c] sm:$0xf]
    %v1125 = vld [vmem:[#allocation11 + $0x20] sm:$0xf]
    %v1126 = vld [vmem:[#allocation11 + $0x24] sm:$0xf]
    %v1127 = vld [vmem:[#allocation11 + $0x28] sm:$0xf]
    %v1128 = vld [vmem:[#allocation11 + $0x2c] sm:$0xf]
    %v1129 = vld [vmem:[#allocation11 + $0x30] sm:$0xf]
    %v1130 = vld [vmem:[#allocation11 + $0x34] sm:$0xf]
    %v1131 = vld [vmem:[#allocation11 + $0x38] sm:$0xf]
    %v1132 = vld [vmem:[#allocation11 + $0x3c] sm:$0xf]
    %v1133 = vld [vmem:[%s8] sm:$0x1]
    %v1135 = vperm.slane %v1133, 0
    %v1153 = vunpack.c.l.b16 %v1117
    %v1154 = vunpack.c.l.b16 %v1118
    %v1155 = vunpack.c.l.b16 %v1119
    %v1156 = vunpack.c.l.b16 %v1120
    %v1157 = vunpack.c.l.b16 %v1121
    %v1158 = vunpack.c.l.b16 %v1122
    %v1159 = vunpack.c.l.b16 %v1123
    %v1160 = vunpack.c.l.b16 %v1124
    %v1161 = vunpack.c.l.b16 %v1125
    %v1162 = vunpack.c.l.b16 %v1126
    %v1163 = vunpack.c.l.b16 %v1127
    %v1164 = vunpack.c.l.b16 %v1128
    %v1165 = vunpack.c.l.b16 %v1129
    %v1166 = vunpack.c.l.b16 %v1130
    %v1167 = vunpack.c.l.b16 %v1131
    %v1168 = vunpack.c.l.b16 %v1132
    %v1169 = vpack.c.b16 %v1154, %v1153
    %v1170 = vpack.c.b16 %v1156, %v1155
    %v1171 = vpack.c.b16 %v1158, %v1157
    %v1172 = vpack.c.b16 %v1160, %v1159
    %v1173 = vpack.c.b16 %v1162, %v1161
    %v1174 = vpack.c.b16 %v1164, %v1163
    %v1175 = vpack.c.b16 %v1166, %v1165
    %v1176 = vpack.c.b16 %v1168, %v1167
    %1185 = vmatpush.bf16.msra.mxu0 %v1176
    %1186 = vmatpush.bf16.msra.mxu0 %v1175
    %1187 = vmatpush.bf16.msra.mxu0 %v1174
    %1188 = vmatpush.bf16.msra.mxu0 %v1173
    %1189 = vmatpush.bf16.msra.mxu0 %v1172
    %1190 = vmatpush.bf16.msra.mxu0 %v1171
    %1191 = vmatpush.bf16.msra.mxu0 %v1170
    %1192 = vmatpush.bf16.msra.mxu0 %v1169
    %1193 = vmatmul.bf16.gmra.mxu0 %v1116
    %v1194 = vpop.f32.mrf.mxu0
    %v1195 = vadd.f32 %v1135, %v1194
    %v1196 = vpop.f32.mrf.mxu0
    %v1197 = vadd.f32 %v1135, %v1196
    %1198 = vdwg.mxu0
    %v1199 = vmul.f32 %v1195, 0.5
    %v1200 = vmul.f32 %v1197, 0.5
    %v1201 = vmul.f32 %v1195, 0.044715
    %v1202 = vmul.f32 %v1197, 0.044715
    %v1203 = vmul.f32 %v1201, %v1195
    %v1204 = vmul.f32 %v1202, %v1197
    %v1205 = vmul.f32 %v1203, %v1195
    %v1206 = vmul.f32 %v1204, %v1197
    %v1207 = vadd.f32 %v1195, %v1205
    %v1208 = vadd.f32 %v1197, %v1206
    %v1209 = vmul.f32 %v1207, 0.7978846
    %v1210 = vmul.f32 %v1208, 0.7978846
    %v1211 = vtanh.pop %v1209
    %v1212 = vtanh.pop %v1210
    %v1213 = vadd.f32 %v1211, 1.0
    %v1214 = vadd.f32 %v1212, 1.0
    %v1215 = vmul.f32 %v1199, %v1213
    %v1216 = vmul.f32 %v1200, %v1214
    %v1217 = vpack.c.bf16 %v1216, %v1215
    %v1218 = vld [vmem:[#allocation13] sm:$0xf]
    %v1219 = vld [vmem:[#allocation13 + $0x4] sm:$0xf]
    %v1220 = vld [vmem:[#allocation13 + $0x8] sm:$0xf]
    %v1221 = vld [vmem:[#allocation13 + $0xc] sm:$0xf]
    %v1222 = vld [vmem:[#allocation13 + $0x10] sm:$0xf]
    %v1223 = vld [vmem:[#allocation13 + $0x14] sm:$0xf]
    %v1224 = vld [vmem:[#allocation13 + $0x18] sm:$0xf]
    %v1225 = vld [vmem:[#allocation13 + $0x1c] sm:$0xf]
    %v1226 = vld [vmem:[#allocation13 + $0x20] sm:$0xf]
    %v1227 = vld [vmem:[#allocation13 + $0x24] sm:$0xf]
    %v1228 = vld [vmem:[#allocation13 + $0x28] sm:$0xf]
    %v1229 = vld [vmem:[#allocation13 + $0x2c] sm:$0xf]
    %v1230 = vld [vmem:[#allocation13 + $0x30] sm:$0xf]
    %v1231 = vld [vmem:[#allocation13 + $0x34] sm:$0xf]
    %v1232 = vld [vmem:[#allocation13 + $0x38] sm:$0xf]
    %v1233 = vld [vmem:[#allocation13 + $0x3c] sm:$0xf]
    %v1234 = vld [vmem:[%s10] sm:$0x1]
    %v1236 = vperm.slane %v1234, 0
    %v1254 = vunpack.c.l.b16 %v1218
    %v1255 = vunpack.c.l.b16 %v1219
    %v1256 = vunpack.c.l.b16 %v1220
    %v1257 = vunpack.c.l.b16 %v1221
    %v1258 = vunpack.c.l.b16 %v1222
    %v1259 = vunpack.c.l.b16 %v1223
    %v1260 = vunpack.c.l.b16 %v1224
    %v1261 = vunpack.c.l.b16 %v1225
    %v1262 = vunpack.c.l.b16 %v1226
    %v1263 = vunpack.c.l.b16 %v1227
    %v1264 = vunpack.c.l.b16 %v1228
    %v1265 = vunpack.c.l.b16 %v1229
    %v1266 = vunpack.c.l.b16 %v1230
    %v1267 = vunpack.c.l.b16 %v1231
    %v1268 = vunpack.c.l.b16 %v1232
    %v1269 = vunpack.c.l.b16 %v1233
    %v1270 = vpack.c.b16 %v1255, %v1254
    %v1271 = vpack.c.b16 %v1257, %v1256
    %v1272 = vpack.c.b16 %v1259, %v1258
    %v1273 = vpack.c.b16 %v1261, %v1260
    %v1274 = vpack.c.b16 %v1263, %v1262
    %v1275 = vpack.c.b16 %v1265, %v1264
    %v1276 = vpack.c.b16 %v1267, %v1266
    %v1277 = vpack.c.b16 %v1269, %v1268
    %1286 = vmatpush.bf16.msra.mxu0 %v1277
    %1287 = vmatpush.bf16.msra.mxu0 %v1276
    %1288 = vmatpush.bf16.msra.mxu0 %v1275
    %1289 = vmatpush.bf16.msra.mxu0 %v1274
    %1290 = vmatpush.bf16.msra.mxu0 %v1273
    %1291 = vmatpush.bf16.msra.mxu0 %v1272
    %1292 = vmatpush.bf16.msra.mxu0 %v1271
    %1293 = vmatpush.bf16.msra.mxu0 %v1270
    %1294 = vmatmul.bf16.gmra.mxu0 %v1217
    %v1295 = vpop.f32.mrf.mxu0
    %v1296 = vadd.f32 %v1236, %v1295
    %v1297 = vpop.f32.mrf.mxu0
    %v1298 = vadd.f32 %v1236, %v1297
    %1299 = vdwg.mxu0
    %1300 = vst [vmem:[#allocation14] sm:$0xff] %v1296
    %1301 = vst [vmem:[#allocation14 + $0x8] sm:$0xff] %v1298
    // Predicated region
    $region74: #{tpu_custom_call.1} parent=1 // pred_check
      _
    $region75: #{tpu_custom_call.1} parent=1 // pred_check_branch
      %1303 = sbr.rel (0) target = $region77
    $region76: #{tpu_custom_call.1} parent=1 // pred_region
      %1305 = vsyncadd [#allocation4], 0
      %s1306 = sshll.u32 [#allocation14], 4
      %s1307 = int_to_ptr.vmem [resolvable:$true] %s1306
      %s1308 = sshll.u32 %s11, 4
      %s1309 = int_to_ptr.hbm [resolvable:$true] %s1308
      %1314 = dma.vmem_to_hbm [thread:$0]  %s1307, 256, %s1309, [#allocation4], 128, 128, 8
    $region77: #{tpu_custom_call.1} parent=1 // pred_fallthru
      _
    // Predicated region
    $region78: #{tpu_custom_call.1} parent=1 // pred_check
      _
    $region79: #{tpu_custom_call.1} parent=1 // pred_check_branch
      %1316 = sbr.rel (0) target = $region81
    $region80: #{tpu_custom_call.1} parent=1 // pred_region
      %1318 = dma.done [#allocation4], 256
    $region81: #{tpu_custom_call.1} parent=1 // pred_fallthru
      _
    %1319 = vsyncpa [#allocation3], 1
    %1320 = vsyncpa [#allocation6], 1
    %1321 = vsyncpa [#allocation9], 1
    %1322 = vsyncpa [#allocation12], 1
    %1323 = vsyncpa [#allocation4], 1

</llo_original>
